<compile_context>
chip_gen: v7x
topology: tpu7x:2x2x1
jax: 0.10.0
libtpu: 0.0.40
codegen_flags: <defaults>
</compile_context>

<pallas_src>
import functools
import math

import jax
import jax.numpy as jnp
from jax.experimental import pallas as pl
from jax.experimental.pallas import tpu as pltpu


# ----------------------------------------------------------------------------
# tanh-approximate GELU (tanh runs on the otherwise-idle EUP slot)
# ----------------------------------------------------------------------------
def _gelu(x):
    c = 0.7978845608028654  # sqrt(2/pi)
    return 0.5 * x * (1.0 + jnp.tanh(c * (x + 0.044715 * x * x * x)))


# ----------------------------------------------------------------------------
# Pallas kernel: one (batch-tile, layer) grid step.
# Activation lives in a persistent VMEM scratch as (Bt*C, L) f32; matmul inputs
# are cast to bf16 with f32 accumulation.
# ----------------------------------------------------------------------------
def tsmixer_kernel(x_ref, revw_ref, revb_ref,
                   wt1_ref, bt1_ref, wt2_ref, bt2_ref,
                   wc1_ref, bc1_ref, wc2_ref, bc2_ref,
                   wh_ref, bh_ref, out_ref, acc_ref, *,
                   num_channels, batch_tile, eps):
    bf16 = jnp.bfloat16
    f32 = jnp.float32
    C, Bt = num_channels, batch_tile
    layer = pl.program_id(1)

    # ---- RevIN 'norm' once per batch tile (first layer step) ----------------
    @pl.when(layer == 0)
    def _():
        y0 = x_ref[...]                                    # (Bt*C, L) f32
        mean = jnp.mean(y0, axis=1, keepdims=True)
        var = jnp.mean((y0 - mean) ** 2, axis=1, keepdims=True)
        y0 = (y0 - mean) * jax.lax.rsqrt(var + eps)        # rsqrt -> EUP
        acc_ref[...] = y0 * revw_ref[...] + revb_ref[...]  # per-channel affine

    # ---- one ResBlock per layer grid step ------------------------------------
    y = acc_ref[...]                                       # (Bt*C, L) f32

    # temporal mixing: Linear(L -> d) -> GELU -> Linear(d -> L), residual.
    # Batch*channels folded into the matmul M dimension.
    h = _gelu(jnp.dot(y.astype(bf16), wt1_ref[...],
                      preferred_element_type=f32) + bt1_ref[...])
    y = y + jnp.dot(h.astype(bf16), wt2_ref[...],
                    preferred_element_type=f32) + bt2_ref[...]

    # channel mixing: Linear(C -> d) -> GELU -> Linear(d -> C), residual.
    # Plain 2-D matmuls with the un-broadcast (out, in) weights, one (C, L)
    # activation slab per sample in the tile (no weight broadcast / batched
    # einsum materialization).
    # TODO(synk): when seq_len % 128 == 0 this can be regrouped into a single
    # (d, C) @ (C, Bt*L) matmul via an activation relayout; kept per-sample here
    # because that relayout is not lane-aligned for arbitrary seq_len.
    wc1 = wc1_ref[...]                                     # (dp, C)  bf16
    wc2 = wc2_ref[...]                                     # (C, dp)  bf16
    bc1 = bc1_ref[...]                                     # (dp, 1)  f32
    bc2 = bc2_ref[...]                                     # (C, 1)   f32
    for b in range(Bt):
        yb = y[b * C:(b + 1) * C, :]                       # (C, L)
        h2 = _gelu(jnp.dot(wc1, yb.astype(bf16),
                           preferred_element_type=f32) + bc1)
        yb = yb + jnp.dot(wc2, h2.astype(bf16),
                          preferred_element_type=f32) + bc2
        acc_ref[pl.ds(b * C, C), :] = yb

    # ---- head: Linear(seq_len -> pred_len) on the last layer step ------------
    @pl.when(layer == pl.num_programs(1) - 1)
    def _():
        yf = acc_ref[...]
        out_ref[...] = (jnp.dot(yf.astype(bf16), wh_ref[...],
                                preferred_element_type=f32)
                        + bh_ref[...]).astype(out_ref.dtype)


# ----------------------------------------------------------------------------
# Tiling / hardware planning
# ----------------------------------------------------------------------------
def _round_up(n, m):
    return ((n + m - 1) // m) * m


def _hardware_plan():
    """Generation-aware budgets.  VMEM capacity is used as the proxy for the
    generation: v7x reports ~64 MiB per TensorCore (and has 2 TCs to shard the
    'parallel' axis across), v5e/v6e report 128 MiB (1 TC).  Falls back to the
    conservative small-VMEM settings if the query is unavailable."""
    vmem_cap = 64 * 1024 * 1024
    try:
        info = pltpu.get_tpu_info()
        vmem_cap = int(getattr(info, "vmem_capacity_bytes", vmem_cap))
    except Exception:
        pass
    if vmem_cap >= 100 * 1024 * 1024:       # v5e / v6e: big VMEM, single TC
        return dict(vmem_limit=96 * 1024 * 1024,
                    act_budget=16 * 1024 * 1024,
                    want_multi_tile=False)
    return dict(vmem_limit=48 * 1024 * 1024,  # v7x-like: 64 MiB VMEM, 2 TCs
                act_budget=8 * 1024 * 1024,
                want_multi_tile=True)


def _plan_batch_tile(B, C, L, act_budget, want_multi_tile, max_unroll=16):
    """Choose (padded_batch, batch_tile) such that:
       * Bt*C % 8 == 0 (block-legal rows) unless the tile covers the whole batch,
       * the f32 activation tile (Bt*C, L) stays within act_budget,
       * >=2 tiles on 2-TensorCore parts when the batch allows it,
       * Bt is bounded (the channel-mix loop is unrolled Bt times)."""
    g = 8 // math.gcd(C, 8)                   # smallest Bt with Bt*C % 8 == 0
    cap = max(1, act_budget // (C * L * 4))
    cap = min(cap, max_unroll)
    want_tiles = want_multi_tile and B >= 2 * g
    whole_ok = (B * C * L * 4 <= act_budget) and B <= max_unroll
    if whole_ok and not want_tiles:
        return B, B                           # one full-extent (always legal) tile
    bt = max(g, (cap // g) * g)
    if want_tiles:
        bt = min(bt, max(g, ((B // 2) // g) * g))
    bt = min(bt, _round_up(B, g))             # never bigger than the padded batch
    bp = _round_up(B, bt)
    return bp, bt


# ----------------------------------------------------------------------------
# Wrapper
# ----------------------------------------------------------------------------
def tsmixer_forward(x, params, *, eps=1e-5):
    (revw, revb, wt1, bt1, wt2, bt2, wc1, bc1, wc2, bc2, wh, bh) = params
    B, C, L = x.shape
    num_layers, _, d_model = wt1.shape
    P = wh.shape[1]
    assert num_layers >= 1
    bf16 = jnp.bfloat16

    plan = _hardware_plan()
    Bp, Bt = _plan_batch_tile(B, C, L, plan["act_budget"], plan["want_multi_tile"])
    CB = Bt * C
    n_tiles = Bp // Bt

    # zero-pad d_model to a full lane multiple (mathematically exact)
    dp = _round_up(d_model, 128)
    if dp != d_model:
        pad = dp - d_model
        wt1 = jnp.pad(wt1, ((0, 0), (0, 0), (0, pad)))
        bt1 = jnp.pad(bt1, ((0, 0), (0, 0), (0, pad)))
        wt2 = jnp.pad(wt2, ((0, 0), (0, pad), (0, 0)))
        wc1 = jnp.pad(wc1, ((0, 0), (0, pad), (0, 0)))
        bc1 = jnp.pad(bc1, ((0, 0), (0, pad), (0, 0)))
        wc2 = jnp.pad(wc2, ((0, 0), (0, 0), (0, pad)))
    # TODO(synk): num_channels could also be lane-padded (helps odd C on the
    # channel-mix K dim); left unpadded since C is a full-extent block dim here.

    # flatten to (B*C, L) rows (row = b*C + c) and zero-pad the batch so every
    # tile has Bt*C rows (block-legal for any channel count)
    x2 = x.reshape(B * C, L).astype(jnp.float32)
    if Bp != B:
        x2 = jnp.pad(x2, ((0, (Bp - B) * C), (0, 0)))

    # per-row RevIN affine for the flattened (Bt*C, L) tile layout
    revw_rows = jnp.tile(revw, (Bt, 1))
    revb_rows = jnp.tile(revb, (Bt, 1))

    kernel = functools.partial(tsmixer_kernel, num_channels=C,
                               batch_tile=Bt, eps=eps)

    cost = pl.CostEstimate(
        flops=int(num_layers * 8 * Bp * C * L * dp + 2 * Bp * C * L * P),
        transcendentals=int(num_layers * Bp * dp * (C + L) + Bp * C),
        bytes_accessed=int(x2.size * 4 + Bp * C * P * 4
                           + 2 * num_layers * (L * dp + dp * C) * 2
                           + (L * P + P) * 4),
    )

    grid_spec = pltpu.PrefetchScalarGridSpec(
        num_scalar_prefetch=0,
        grid=(n_tiles, num_layers),
        in_specs=[
            pl.BlockSpec((CB, L), lambda i, l: (i, 0)),           # x rows, this tile
            pl.BlockSpec((CB, 1), lambda i, l: (0, 0)),           # RevIN weight rows
            pl.BlockSpec((CB, 1), lambda i, l: (0, 0)),           # RevIN bias rows
            pl.BlockSpec((None, L, dp), lambda i, l: (l, 0, 0)),  # wt1 (per-layer)
            pl.BlockSpec((None, 1, dp), lambda i, l: (l, 0, 0)),  # bt1
            pl.BlockSpec((None, dp, L), lambda i, l: (l, 0, 0)),  # wt2
            pl.BlockSpec((None, 1, L), lambda i, l: (l, 0, 0)),   # bt2
            pl.BlockSpec((None, dp, C), lambda i, l: (l, 0, 0)),  # wc1
            pl.BlockSpec((None, dp, 1), lambda i, l: (l, 0, 0)),  # bc1
            pl.BlockSpec((None, C, dp), lambda i, l: (l, 0, 0)),  # wc2
            pl.BlockSpec((None, C, 1), lambda i, l: (l, 0, 0)),   # bc2
            pl.BlockSpec((L, P), lambda i, l: (0, 0)),            # head weight
            pl.BlockSpec((1, P), lambda i, l: (0, 0)),            # head bias
        ],
        out_specs=pl.BlockSpec((CB, P), lambda i, l: (i, 0)),
        scratch_shapes=[pltpu.VMEM((CB, L), jnp.float32)],        # persistent activation
    )

    out = pl.pallas_call(
        kernel,
        out_shape=jax.ShapeDtypeStruct((Bp * C, P), jnp.float32),
        grid_spec=grid_spec,
        compiler_params=pltpu.CompilerParams(
            dimension_semantics=("parallel", "arbitrary"),
            vmem_limit_bytes=plan["vmem_limit"]),
        cost_estimate=cost,
    )(x2, revw_rows, revb_rows,
      wt1.astype(bf16), bt1, wt2.astype(bf16), bt2,
      wc1.astype(bf16), bc1, wc2.astype(bf16), bc2,
      wh.astype(bf16), bh)

    return out.reshape(Bp, C, P)[:B]


# ----------------------------------------------------------------------------
# Deterministic parameter init (synthetic; xavier-uniform weights, small biases)
# ----------------------------------------------------------------------------
def init_params(key, seq_len, pred_len, num_layers, d_model, num_channels):
    C, L, P = num_channels, seq_len, pred_len
    keys = list(jax.random.split(key, 8 * num_layers + 8))
    kit = iter(keys)

    def xavier(k, fan_in, fan_out, shape):
        bound = (6.0 / (fan_in + fan_out)) ** 0.5
        return jax.random.uniform(k, shape, jnp.float32, -bound, bound)

    def smallb(k, shape):
        return 0.01 * jax.random.normal(k, shape, jnp.float32)

    wt1 = jnp.stack([xavier(next(kit), L, d_model, (L, d_model)) for _ in range(num_layers)])
    bt1 = jnp.stack([smallb(next(kit), (1, d_model)) for _ in range(num_layers)])
    wt2 = jnp.stack([xavier(next(kit), d_model, L, (d_model, L)) for _ in range(num_layers)])
    bt2 = jnp.stack([smallb(next(kit), (1, L)) for _ in range(num_layers)])
    wc1 = jnp.stack([xavier(next(kit), C, d_model, (d_model, C)) for _ in range(num_layers)])
    bc1 = jnp.stack([smallb(next(kit), (d_model, 1)) for _ in range(num_layers)])
    wc2 = jnp.stack([xavier(next(kit), d_model, C, (C, d_model)) for _ in range(num_layers)])
    bc2 = jnp.stack([smallb(next(kit), (C, 1)) for _ in range(num_layers)])
    wh = xavier(next(kit), L, P, (L, P))
    bh = smallb(next(kit), (1, P))
    revw = 1.0 + 0.05 * jax.random.normal(next(kit), (C, 1), jnp.float32)
    revb = 0.05 * jax.random.normal(next(kit), (C, 1), jnp.float32)
    return (revw, revb, wt1, bt1, wt2, bt2, wc1, bc1, wc2, bc2, wh, bh)


# ----------------------------------------------------------------------------
# Pure-JAX reference (same math/precision: bf16 matmul inputs, f32 accumulation)
# ----------------------------------------------------------------------------
def tsmixer_reference(x, params, eps=1e-5):
    (revw, revb, wt1, bt1, wt2, bt2, wc1, bc1, wc2, bc2, wh, bh) = params
    bf16 = jnp.bfloat16
    f32 = jnp.float32
    mean = x.mean(-1, keepdims=True)
    var = ((x - mean) ** 2).mean(-1, keepdims=True)
    y = (x - mean) * jax.lax.rsqrt(var + eps)
    y = y * revw[None] + revb[None]
    for l in range(wt1.shape[0]):
        h = _gelu(jnp.einsum('bcl,ld->bcd', y.astype(bf16), wt1[l].astype(bf16),
                             preferred_element_type=f32) + bt1[l][None])
        y = y + jnp.einsum('bcd,dl->bcl', h.astype(bf16), wt2[l].astype(bf16),
                           preferred_element_type=f32) + bt2[l][None]
        h2 = _gelu(jnp.einsum('dc,bcl->bdl', wc1[l].astype(bf16), y.astype(bf16),
                              preferred_element_type=f32) + bc1[l][None])
        y = y + jnp.einsum('cd,bdl->bcl', wc2[l].astype(bf16), h2.astype(bf16),
                           preferred_element_type=f32) + bc2[l][None]
    return jnp.einsum('bcl,lp->bcp', y.astype(bf16), wh.astype(bf16),
                      preferred_element_type=f32) + bh[None]


if __name__ == "__main__":
    B, C, L, P, d_model, n_layers = 2, 8, 16, 8, 32, 2

    key = jax.random.PRNGKey(0)
    kx, kp = jax.random.split(key)
    x = jax.random.normal(kx, (B, C, L), jnp.float32)
    params = init_params(kp, L, P, n_layers, d_model, C)

    out = tsmixer_forward(x, params)
    jax.block_until_ready(out)
    assert out.shape == (B, C, P), out.shape

    ref = tsmixer_reference(x, params)
    if not jnp.allclose(out, ref, atol=2e-2, rtol=2e-2):
        err = float(jnp.max(jnp.abs(out - ref)))
        raise AssertionError(f"Pallas kernel does not match JAX reference (max err {err})")
    print("KERNEL_OK")
</pallas_src>

<mosaic_0001>
module attributes {stable_mosaic.version = 11 : i64} {
  func.func @tsmixer_kernel(%arg0: i32, %arg1: i32, %arg2: memref<8x16xf32, #tpu.memory_space<vmem>>, %arg3: memref<8x1xf32, #tpu.memory_space<vmem>>, %arg4: memref<8x1xf32, #tpu.memory_space<vmem>>, %arg5: memref<1x16x128xbf16, #tpu.memory_space<vmem>>, %arg6: memref<1x1x128xf32, #tpu.memory_space<vmem>>, %arg7: memref<1x128x16xbf16, #tpu.memory_space<vmem>>, %arg8: memref<1x1x16xf32, #tpu.memory_space<vmem>>, %arg9: memref<1x128x8xbf16, #tpu.memory_space<vmem>>, %arg10: memref<1x128x1xf32, #tpu.memory_space<vmem>>, %arg11: memref<1x8x128xbf16, #tpu.memory_space<vmem>>, %arg12: memref<1x8x1xf32, #tpu.memory_space<vmem>>, %arg13: memref<16x8xbf16, #tpu.memory_space<vmem>>, %arg14: memref<1x8xf32, #tpu.memory_space<vmem>>, %arg15: memref<8x8xf32, #tpu.memory_space<vmem>>, %arg16: memref<8x16xf32, #tpu.memory_space<vmem>>) attributes {dimension_semantics = [#tpu.dimension_semantics<parallel>, #tpu.dimension_semantics<arbitrary>], iteration_bounds = array<i64: 2, 2>, scalar_prefetch = 0 : i64, scratch_operands = 1 : i64, tpu.core_type = #tpu.core_type<tc>, window_params = [{transform_indices = @transform_0, window_bounds = array<i64: 8, 16>}, {pipeline_mode = #tpu.pipeline_mode<synchronous>, transform_indices = @transform_1, window_bounds = array<i64: 8, 1>}, {pipeline_mode = #tpu.pipeline_mode<synchronous>, transform_indices = @transform_2, window_bounds = array<i64: 8, 1>}, {transform_indices = @transform_3, window_bounds = array<i64: 1, 16, 128>}, {transform_indices = @transform_4, window_bounds = array<i64: 1, 1, 128>}, {transform_indices = @transform_5, window_bounds = array<i64: 1, 128, 16>}, {transform_indices = @transform_6, window_bounds = array<i64: 1, 1, 16>}, {transform_indices = @transform_7, window_bounds = array<i64: 1, 128, 8>}, {transform_indices = @transform_8, window_bounds = array<i64: 1, 128, 1>}, {transform_indices = @transform_9, window_bounds = array<i64: 1, 8, 128>}, {transform_indices = @transform_10, window_bounds = array<i64: 1, 8, 1>}, {pipeline_mode = #tpu.pipeline_mode<synchronous>, transform_indices = @transform_11, window_bounds = array<i64: 16, 8>}, {pipeline_mode = #tpu.pipeline_mode<synchronous>, transform_indices = @transform_12, window_bounds = array<i64: 1, 8>}, {transform_indices = @transform_13, window_bounds = array<i64: 8, 8>}]} {
    %c0_i32 = arith.constant 0 : i32
    %0 = arith.cmpi eq, %arg1, %c0_i32 : i32
    %1 = arith.extui %0 : i1 to i32
    %c0_i32_0 = arith.constant 0 : i32
    %2 = arith.cmpi ne, %1, %c0_i32_0 : i32
    scf.if %2 {
      %c0_40 = arith.constant 0 : index
      %c0_41 = arith.constant 0 : index
      %68 = vector.load %arg2[%c0_40, %c0_41] : memref<8x16xf32, #tpu.memory_space<vmem>>, vector<8x16xf32>
      %cst_42 = arith.constant dense<0.000000e+00> : vector<8xf32>
      %69 = vector.multi_reduction <add>, %68, %cst_42 [1] : vector<8x16xf32> to vector<8xf32>
      %70 = vector.shape_cast %69 : vector<8xf32> to vector<8x1xf32>
      %cst_43 = arith.constant 1.600000e+01 : f32
      %71 = vector.broadcast %cst_43 : f32 to vector<8x1xf32>
      %72 = arith.divf %70, %71 : vector<8x1xf32>
      %73 = vector.broadcast %72 : vector<8x1xf32> to vector<8x16xf32>
      %74 = arith.subf %68, %73 : vector<8x16xf32>
      %75 = arith.mulf %74, %74 : vector<8x16xf32>
      %cst_44 = arith.constant dense<0.000000e+00> : vector<8xf32>
      %76 = vector.multi_reduction <add>, %75, %cst_44 [1] : vector<8x16xf32> to vector<8xf32>
      %77 = vector.shape_cast %76 : vector<8xf32> to vector<8x1xf32>
      %cst_45 = arith.constant 1.600000e+01 : f32
      %78 = vector.broadcast %cst_45 : f32 to vector<8x1xf32>
      %79 = arith.divf %77, %78 : vector<8x1xf32>
      %80 = vector.broadcast %72 : vector<8x1xf32> to vector<8x16xf32>
      %81 = arith.subf %68, %80 : vector<8x16xf32>
      %cst_46 = arith.constant 9.99999974E-6 : f32
      %82 = vector.broadcast %cst_46 : f32 to vector<8x1xf32>
      %83 = arith.addf %79, %82 : vector<8x1xf32>
      %84 = math.rsqrt %83 : vector<8x1xf32>
      %85 = vector.broadcast %84 : vector<8x1xf32> to vector<8x16xf32>
      %86 = arith.mulf %81, %85 : vector<8x16xf32>
      %c0_47 = arith.constant 0 : index
      %c0_48 = arith.constant 0 : index
      %87 = vector.load %arg3[%c0_47, %c0_48] : memref<8x1xf32, #tpu.memory_space<vmem>>, vector<8x1xf32>
      %88 = vector.broadcast %87 : vector<8x1xf32> to vector<8x16xf32>
      %89 = arith.mulf %86, %88 : vector<8x16xf32>
      %c0_49 = arith.constant 0 : index
      %c0_50 = arith.constant 0 : index
      %90 = vector.load %arg4[%c0_49, %c0_50] : memref<8x1xf32, #tpu.memory_space<vmem>>, vector<8x1xf32>
      %91 = vector.broadcast %90 : vector<8x1xf32> to vector<8x16xf32>
      %92 = arith.addf %89, %91 : vector<8x16xf32>
      %c0_51 = arith.constant 0 : index
      %c0_52 = arith.constant 0 : index
      %93 = vector.load %arg16[%c0_51, %c0_52] : memref<8x16xf32, #tpu.memory_space<vmem>>, vector<8x16xf32>
      tpu.vector_store %arg16[%c0_51, %c0_52], %92 {strides = array<i32>} : memref<8x16xf32, #tpu.memory_space<vmem>>, vector<8x16xf32>,
    } else {
    }
    %c0 = arith.constant 0 : index
    %c0_1 = arith.constant 0 : index
    %3 = vector.load %arg16[%c0, %c0_1] : memref<8x16xf32, #tpu.memory_space<vmem>>, vector<8x16xf32>
    %4 = arith.truncf %3 : vector<8x16xf32> to vector<8x16xbf16>
    %c0_2 = arith.constant 0 : index
    %c0_3 = arith.constant 0 : index
    %c0_4 = arith.constant 0 : index
    %5 = vector.load %arg5[%c0_2, %c0_3, %c0_4] : memref<1x16x128xbf16, #tpu.memory_space<vmem>>, vector<1x16x128xbf16>
    %6 = vector.shape_cast %5 : vector<1x16x128xbf16> to vector<16x128xbf16>
    %cst = arith.constant dense<0.000000e+00> : vector<8x128xf32>
    %7 = tpu.matmul %4, %6, %cst {dimension_numbers = #tpu.dot_dimension_numbers<[1], [0], [0], [1], [0, 0, 1, 1], [], []>} : vector<8x16xbf16>, vector<16x128xbf16>, vector<8x128xf32> -> vector<8x128xf32>
    %c0_5 = arith.constant 0 : index
    %c0_6 = arith.constant 0 : index
    %c0_7 = arith.constant 0 : index
    %8 = vector.load %arg6[%c0_5, %c0_6, %c0_7] : memref<1x1x128xf32, #tpu.memory_space<vmem>>, vector<1x1x128xf32>
    %9 = vector.shape_cast %8 : vector<1x1x128xf32> to vector<1x128xf32>
    %10 = vector.broadcast %9 : vector<1x128xf32> to vector<8x128xf32>
    %11 = arith.addf %7, %10 : vector<8x128xf32>
    %cst_8 = arith.constant 5.000000e-01 : f32
    %12 = vector.broadcast %cst_8 : f32 to vector<8x128xf32>
    %13 = arith.mulf %12, %11 : vector<8x128xf32>
    %cst_9 = arith.constant 4.471500e-02 : f32
    %14 = vector.broadcast %cst_9 : f32 to vector<8x128xf32>
    %15 = arith.mulf %14, %11 : vector<8x128xf32>
    %16 = arith.mulf %15, %11 : vector<8x128xf32>
    %17 = arith.mulf %16, %11 : vector<8x128xf32>
    %18 = arith.addf %11, %17 : vector<8x128xf32>
    %cst_10 = arith.constant 0.797884583 : f32
    %19 = vector.broadcast %cst_10 : f32 to vector<8x128xf32>
    %20 = arith.mulf %19, %18 : vector<8x128xf32>
    %21 = math.tanh %20 : vector<8x128xf32>
    %cst_11 = arith.constant 1.000000e+00 : f32
    %22 = vector.broadcast %cst_11 : f32 to vector<8x128xf32>
    %23 = arith.addf %22, %21 : vector<8x128xf32>
    %24 = arith.mulf %13, %23 : vector<8x128xf32>
    %25 = arith.truncf %24 : vector<8x128xf32> to vector<8x128xbf16>
    %c0_12 = arith.constant 0 : index
    %c0_13 = arith.constant 0 : index
    %c0_14 = arith.constant 0 : index
    %26 = vector.load %arg7[%c0_12, %c0_13, %c0_14] : memref<1x128x16xbf16, #tpu.memory_space<vmem>>, vector<1x128x16xbf16>
    %27 = vector.shape_cast %26 : vector<1x128x16xbf16> to vector<128x16xbf16>
    %cst_15 = arith.constant dense<0.000000e+00> : vector<8x16xf32>
    %28 = tpu.matmul %25, %27, %cst_15 {dimension_numbers = #tpu.dot_dimension_numbers<[1], [0], [0], [1], [0, 0, 1, 1], [], []>} : vector<8x128xbf16>, vector<128x16xbf16>, vector<8x16xf32> -> vector<8x16xf32>
    %29 = arith.addf %3, %28 : vector<8x16xf32>
    %c0_16 = arith.constant 0 : index
    %c0_17 = arith.constant 0 : index
    %c0_18 = arith.constant 0 : index
    %30 = vector.load %arg8[%c0_16, %c0_17, %c0_18] : memref<1x1x16xf32, #tpu.memory_space<vmem>>, vector<1x1x16xf32>
    %31 = vector.shape_cast %30 : vector<1x1x16xf32> to vector<1x16xf32>
    %32 = vector.broadcast %31 : vector<1x16xf32> to vector<8x16xf32>
    %33 = arith.addf %29, %32 : vector<8x16xf32>
    %c0_19 = arith.constant 0 : index
    %c0_20 = arith.constant 0 : index
    %c0_21 = arith.constant 0 : index
    %34 = vector.load %arg9[%c0_19, %c0_20, %c0_21] : memref<1x128x8xbf16, #tpu.memory_space<vmem>>, vector<1x128x8xbf16>
    %35 = vector.shape_cast %34 : vector<1x128x8xbf16> to vector<128x8xbf16>
    %c0_22 = arith.constant 0 : index
    %c0_23 = arith.constant 0 : index
    %c0_24 = arith.constant 0 : index
    %36 = vector.load %arg11[%c0_22, %c0_23, %c0_24] : memref<1x8x128xbf16, #tpu.memory_space<vmem>>, vector<1x8x128xbf16>
    %37 = vector.shape_cast %36 : vector<1x8x128xbf16> to vector<8x128xbf16>
    %c0_25 = arith.constant 0 : index
    %c0_26 = arith.constant 0 : index
    %c0_27 = arith.constant 0 : index
    %38 = vector.load %arg10[%c0_25, %c0_26, %c0_27] : memref<1x128x1xf32, #tpu.memory_space<vmem>>, vector<1x128x1xf32>
    %39 = vector.shape_cast %38 : vector<1x128x1xf32> to vector<128x1xf32>
    %c0_28 = arith.constant 0 : index
    %c0_29 = arith.constant 0 : index
    %c0_30 = arith.constant 0 : index
    %40 = vector.load %arg12[%c0_28, %c0_29, %c0_30] : memref<1x8x1xf32, #tpu.memory_space<vmem>>, vector<1x8x1xf32>
    %41 = vector.shape_cast %40 : vector<1x8x1xf32> to vector<8x1xf32>
    %42 = arith.truncf %33 : vector<8x16xf32> to vector<8x16xbf16>
    %cst_31 = arith.constant dense<0.000000e+00> : vector<128x16xf32>
    %43 = tpu.matmul %35, %42, %cst_31 {dimension_numbers = #tpu.dot_dimension_numbers<[1], [0], [0], [1], [0, 0, 1, 1], [], []>} : vector<128x8xbf16>, vector<8x16xbf16>, vector<128x16xf32> -> vector<128x16xf32>
    %44 = vector.broadcast %39 : vector<128x1xf32> to vector<128x16xf32>
    %45 = arith.addf %43, %44 : vector<128x16xf32>
    %cst_32 = arith.constant 5.000000e-01 : f32
    %46 = vector.broadcast %cst_32 : f32 to vector<128x16xf32>
    %47 = arith.mulf %46, %45 : vector<128x16xf32>
    %cst_33 = arith.constant 4.471500e-02 : f32
    %48 = vector.broadcast %cst_33 : f32 to vector<128x16xf32>
    %49 = arith.mulf %48, %45 : vector<128x16xf32>
    %50 = arith.mulf %49, %45 : vector<128x16xf32>
    %51 = arith.mulf %50, %45 : vector<128x16xf32>
    %52 = arith.addf %45, %51 : vector<128x16xf32>
    %cst_34 = arith.constant 0.797884583 : f32
    %53 = vector.broadcast %cst_34 : f32 to vector<128x16xf32>
    %54 = arith.mulf %53, %52 : vector<128x16xf32>
    %55 = math.tanh %54 : vector<128x16xf32>
    %cst_35 = arith.constant 1.000000e+00 : f32
    %56 = vector.broadcast %cst_35 : f32 to vector<128x16xf32>
    %57 = arith.addf %56, %55 : vector<128x16xf32>
    %58 = arith.mulf %47, %57 : vector<128x16xf32>
    %59 = arith.truncf %58 : vector<128x16xf32> to vector<128x16xbf16>
    %cst_36 = arith.constant dense<0.000000e+00> : vector<8x16xf32>
    %60 = tpu.matmul %37, %59, %cst_36 {dimension_numbers = #tpu.dot_dimension_numbers<[1], [0], [0], [1], [0, 0, 1, 1], [], []>} : vector<8x128xbf16>, vector<128x16xbf16>, vector<8x16xf32> -> vector<8x16xf32>
    %61 = arith.addf %33, %60 : vector<8x16xf32>
    %62 = vector.broadcast %41 : vector<8x1xf32> to vector<8x16xf32>
    %63 = arith.addf %61, %62 : vector<8x16xf32>
    %c0_37 = arith.constant 0 : index
    %c0_38 = arith.constant 0 : index
    %64 = vector.load %arg16[%c0_37, %c0_38] : memref<8x16xf32, #tpu.memory_space<vmem>>, vector<8x16xf32>
    tpu.vector_store %arg16[%c0_37, %c0_38], %63 {strides = array<i32>} : memref<8x16xf32, #tpu.memory_space<vmem>>, vector<8x16xf32>,
    %c1_i32 = arith.constant 1 : i32
    %65 = arith.cmpi eq, %arg1, %c1_i32 : i32
    %66 = arith.extui %65 : i1 to i32
    %c0_i32_39 = arith.constant 0 : i32
    %67 = arith.cmpi ne, %66, %c0_i32_39 : i32
    scf.if %67 {
      %c0_40 = arith.constant 0 : index
      %c0_41 = arith.constant 0 : index
      %68 = vector.load %arg16[%c0_40, %c0_41] : memref<8x16xf32, #tpu.memory_space<vmem>>, vector<8x16xf32>
      %69 = arith.truncf %68 : vector<8x16xf32> to vector<8x16xbf16>
      %c0_42 = arith.constant 0 : index
      %c0_43 = arith.constant 0 : index
      %70 = vector.load %arg13[%c0_42, %c0_43] : memref<16x8xbf16, #tpu.memory_space<vmem>>, vector<16x8xbf16>
      %cst_44 = arith.constant dense<0.000000e+00> : vector<8x8xf32>
      %71 = tpu.matmul %69, %70, %cst_44 {dimension_numbers = #tpu.dot_dimension_numbers<[1], [0], [0], [1], [0, 0, 1, 1], [], []>} : vector<8x16xbf16>, vector<16x8xbf16>, vector<8x8xf32> -> vector<8x8xf32>
      %c0_45 = arith.constant 0 : index
      %c0_46 = arith.constant 0 : index
      %72 = vector.load %arg14[%c0_45, %c0_46] : memref<1x8xf32, #tpu.memory_space<vmem>>, vector<1x8xf32>
      %73 = vector.broadcast %72 : vector<1x8xf32> to vector<8x8xf32>
      %74 = arith.addf %71, %73 : vector<8x8xf32>
      %c0_47 = arith.constant 0 : index
      %c0_48 = arith.constant 0 : index
      %75 = vector.load %arg15[%c0_47, %c0_48] : memref<8x8xf32, #tpu.memory_space<vmem>>, vector<8x8xf32>
      tpu.vector_store %arg15[%c0_47, %c0_48], %74 {strides = array<i32>} : memref<8x8xf32, #tpu.memory_space<vmem>>, vector<8x8xf32>,
    } else {
    }
    return
  }
  func.func @transform_0(%arg0: i32, %arg1: i32) -> (i32, i32) {
    %c0_i32 = arith.constant 0 : i32
    %c0_i32_0 = arith.constant 0 : i32
    return %arg0, %c0_i32 : i32, i32
  }
  func.func @transform_1(%arg0: i32, %arg1: i32) -> (i32, i32) {
    %c0_i32 = arith.constant 0 : i32
    %c0_i32_0 = arith.constant 0 : i32
    %c0_i32_1 = arith.constant 0 : i32
    return %c0_i32, %c0_i32_0 : i32, i32
  }
  func.func @transform_2(%arg0: i32, %arg1: i32) -> (i32, i32) {
    %c0_i32 = arith.constant 0 : i32
    %c0_i32_0 = arith.constant 0 : i32
    %c0_i32_1 = arith.constant 0 : i32
    return %c0_i32, %c0_i32_0 : i32, i32
  }
  func.func @transform_3(%arg0: i32, %arg1: i32) -> (i32, i32, i32) {
    %c0_i32 = arith.constant 0 : i32
    %c0_i32_0 = arith.constant 0 : i32
    %c0_i32_1 = arith.constant 0 : i32
    return %arg1, %c0_i32, %c0_i32_0 : i32, i32, i32
  }
  func.func @transform_4(%arg0: i32, %arg1: i32) -> (i32, i32, i32) {
    %c0_i32 = arith.constant 0 : i32
    %c0_i32_0 = arith.constant 0 : i32
    %c0_i32_1 = arith.constant 0 : i32
    return %arg1, %c0_i32, %c0_i32_0 : i32, i32, i32
  }
  func.func @transform_5(%arg0: i32, %arg1: i32) -> (i32, i32, i32) {
    %c0_i32 = arith.constant 0 : i32
    %c0_i32_0 = arith.constant 0 : i32
    %c0_i32_1 = arith.constant 0 : i32
    return %arg1, %c0_i32, %c0_i32_0 : i32, i32, i32
  }
  func.func @transform_6(%arg0: i32, %arg1: i32) -> (i32, i32, i32) {
    %c0_i32 = arith.constant 0 : i32
    %c0_i32_0 = arith.constant 0 : i32
    %c0_i32_1 = arith.constant 0 : i32
    return %arg1, %c0_i32, %c0_i32_0 : i32, i32, i32
  }
  func.func @transform_7(%arg0: i32, %arg1: i32) -> (i32, i32, i32) {
    %c0_i32 = arith.constant 0 : i32
    %c0_i32_0 = arith.constant 0 : i32
    %c0_i32_1 = arith.constant 0 : i32
    return %arg1, %c0_i32, %c0_i32_0 : i32, i32, i32
  }
  func.func @transform_8(%arg0: i32, %arg1: i32) -> (i32, i32, i32) {
    %c0_i32 = arith.constant 0 : i32
    %c0_i32_0 = arith.constant 0 : i32
    %c0_i32_1 = arith.constant 0 : i32
    return %arg1, %c0_i32, %c0_i32_0 : i32, i32, i32
  }
  func.func @transform_9(%arg0: i32, %arg1: i32) -> (i32, i32, i32) {
    %c0_i32 = arith.constant 0 : i32
    %c0_i32_0 = arith.constant 0 : i32
    %c0_i32_1 = arith.constant 0 : i32
    return %arg1, %c0_i32, %c0_i32_0 : i32, i32, i32
  }
  func.func @transform_10(%arg0: i32, %arg1: i32) -> (i32, i32, i32) {
    %c0_i32 = arith.constant 0 : i32
    %c0_i32_0 = arith.constant 0 : i32
    %c0_i32_1 = arith.constant 0 : i32
    return %arg1, %c0_i32, %c0_i32_0 : i32, i32, i32
  }
  func.func @transform_11(%arg0: i32, %arg1: i32) -> (i32, i32) {
    %c0_i32 = arith.constant 0 : i32
    %c0_i32_0 = arith.constant 0 : i32
    %c0_i32_1 = arith.constant 0 : i32
    return %c0_i32, %c0_i32_0 : i32, i32
  }
  func.func @transform_12(%arg0: i32, %arg1: i32) -> (i32, i32) {
    %c0_i32 = arith.constant 0 : i32
    %c0_i32_0 = arith.constant 0 : i32
    %c0_i32_1 = arith.constant 0 : i32
    return %c0_i32, %c0_i32_0 : i32, i32
  }
  func.func @transform_13(%arg0: i32, %arg1: i32) -> (i32, i32) {
    %c0_i32 = arith.constant 0 : i32
    %c0_i32_0 = arith.constant 0 : i32
    return %arg0, %c0_i32 : i32, i32
  }
}

</mosaic_0001>

<llo_original>
// kernel: tpu_custom_call.1
$region0: #{tpu_custom_call.1}
  #allocation0 [shape = 'u32[]', space=smem, size = 0x4, offset = 0x4, fixed_abs, tag = 'smem constant byte address 0x4 - core index']
  #allocation1 [shape = 'u32[144,128]{1,0:T(1,128)}', space=vmem, size = 0x12000, scoped, tag = 'internal scratch']
  #allocation2 [shape = 'f32[8,16]{1,0:T(8,128)}', space=vmem, size = 0x1000, scoped, tag = 'scratch operand']
  %s0 = inlined_call_operand.vmem [shape: f32[16,16], index: 0, kind: input, shape index: {}]
  %s1 = inlined_call_operand.vmem [shape: f32[8,1], index: 1, kind: input, shape index: {}]
  %s2 = inlined_call_operand.vmem [shape: f32[8,1], index: 2, kind: input, shape index: {}]
  %s3 = inlined_call_operand.vmem [shape: bf16[2,16,128], index: 3, kind: input, shape index: {}]
  %s4 = inlined_call_operand.vmem [shape: f32[2,1,128], index: 4, kind: input, shape index: {}]
  %s5 = inlined_call_operand.vmem [shape: bf16[2,128,16], index: 5, kind: input, shape index: {}]
  %s6 = inlined_call_operand.vmem [shape: f32[2,1,16], index: 6, kind: input, shape index: {}]
  %s7 = inlined_call_operand.vmem [shape: bf16[2,128,8], index: 7, kind: input, shape index: {}]
  %s8 = inlined_call_operand.vmem [shape: f32[2,128,1], index: 8, kind: input, shape index: {}]
  %s9 = inlined_call_operand.vmem [shape: bf16[2,8,128], index: 9, kind: input, shape index: {}]
  %s10 = inlined_call_operand.vmem [shape: f32[2,8,1], index: 10, kind: input, shape index: {}]
  %s11 = inlined_call_operand.vmem [shape: bf16[16,8], index: 11, kind: input, shape index: {}]
  %s12 = inlined_call_operand.vmem [shape: f32[1,8], index: 12, kind: input, shape index: {}]
  %s13 = inlined_call_operand.vmem [shape: f32[16,8], index: 13, kind: output, shape index: {}]
  %s14 = sld [smem:[#allocation0]]
  $region93: #{tpu_custom_call.1} parent=0
    _
  %s16 = ssub.s32 1, %s14
  %s17 = scalar_select 0, %s16, %s14
  loop: start=0, step=1, limit=6
  $region2: #{tpu_custom_call.1} parent=0 // loop_pre_header
    _
  $region3: #{tpu_custom_call.1} parent=0 // loop_header
    %s19 = sphi 0, %s23
    %p20 = scmp.ge.s32.totalorder %s19, 6
    %s26 = sphi 0, %s38
    %s27 = sphi 0, %s34
    %s28 = sphi 0, %s26
    %s29 = sphi 0, %s27
    %s30 = sphi 0, %s28
    %s31 = sphi 0, %s29
    %s41 = sphi 0, %s43
    %s44 = sphi 0, %s41
    %s45 = sphi 0, %s44
    %s61 = sphi 0, %s45
    %s65 = sphi 0, %s65
    %s67 = sphi 0, %s65
    %s68 = sphi 0, %s67
    %s82 = sphi 0, %s68
    %s86 = sphi 0, %s86
    %s88 = sphi 0, %s86
    %s89 = sphi 0, %s88
    %s103 = sphi 0, %s89
    %s109 = sphi 0, %s111
    %s112 = sphi 0, %s109
    %s113 = sphi 0, %s112
    %s129 = sphi 0, %s113
    %s135 = sphi 0, %s137
    %s138 = sphi 0, %s135
    %s139 = sphi 0, %s138
    %s155 = sphi 0, %s139
    %s161 = sphi 0, %s163
    %s164 = sphi 0, %s161
    %s165 = sphi 0, %s164
    %s181 = sphi 0, %s165
    %s187 = sphi 0, %s189
    %s190 = sphi 0, %s187
    %s191 = sphi 0, %s190
    %s207 = sphi 0, %s191
    %s213 = sphi 0, %s215
    %s216 = sphi 0, %s213
    %s217 = sphi 0, %s216
    %s233 = sphi 0, %s217
    %s239 = sphi 0, %s241
    %s242 = sphi 0, %s239
    %s243 = sphi 0, %s242
    %s259 = sphi 0, %s243
    %s265 = sphi 0, %s267
    %s268 = sphi 0, %s265
    %s269 = sphi 0, %s268
    %s285 = sphi 0, %s269
    %s291 = sphi 0, %s293
    %s294 = sphi 0, %s291
    %s295 = sphi 0, %s294
    %s311 = sphi 0, %s295
    %s315 = sphi 0, %s315
    %s317 = sphi 0, %s315
    %s318 = sphi 0, %s317
    %s332 = sphi 0, %s318
    %s336 = sphi 0, %s336
    %s338 = sphi 0, %s336
    %s339 = sphi 0, %s338
    %s353 = sphi 0, %s339
    %s359 = sphi 0, %s361
    %s362 = sphi 0, %s359
    %s363 = sphi 0, %s362
    %s379 = sphi 0, %s363
  $region4: #{tpu_custom_call.1} parent=0 // loop_header_branch
    %22 = sbr.rel (%p20) target = $region8
  $region5: #{tpu_custom_call.1} parent=0 // loop_body
    %s24 = ssub.s32 %s19, 1
    %s25 = ssub.s32 %s19, 2
    %s32 = sadd.s32 1, %s27
    %p33 = scmp.ge.s32.totalorder %s32, 2
    %s34 = scalar_select %p33, 0, %s32
    %s35 = sadd.s32 1, %s26
    %s36 = scalar_select %p33, %s35, %s26
    %p37 = scmp.ge.s32.totalorder %s36, 2
    %s38 = scalar_select %p37, 0, %s36
    %s39 = ssub.s32 %s26, %s38
    %p40 = scmp.eq.s32.totalorder %s39, 0
    %s42 = sadd.s32 %s41, 1
    %s43 = scalar_select %p40, %s41, %s42
    %p46 = pneg %p40
    %p47 = scmp.eq.s32.totalorder %s19, 3
    %p48 = por %p46, %p47
    %p49 = scmp.ne.s32.totalorder %s41, %s44
    %p50 = scmp.eq.s32.totalorder %s19, 0
    %p51 = por %p49, %p50
    %p52 = scmp.ne.s32.totalorder %s41, %s44
    %p53 = scmp.eq.s32.totalorder %s24, 3
    %p54 = por %p52, %p53
    %p55 = scmp.ne.s32.totalorder %s44, %s45
    %p56 = scmp.eq.s32.totalorder %s24, 0
    %p57 = por %p55, %p56
    %p58 = scmp.ne.s32.totalorder %s44, %s45
    %p59 = scmp.eq.s32.totalorder %s25, 3
    %p60 = por %p58, %p59
    %p62 = scmp.ne.s32.totalorder %s45, %s61
    %p63 = scmp.eq.s32.totalorder %s25, 0
    %p64 = por %p62, %p63
    %s66 = sadd.s32 %s65, 1
    %p69 = scmp.eq.s32.totalorder %s19, 3
    %p70 = scmp.ne.s32.totalorder %s65, %s67
    %p71 = scmp.eq.s32.totalorder %s19, 0
    %p72 = por %p70, %p71
    %p73 = scmp.ne.s32.totalorder %s65, %s67
    %p74 = scmp.eq.s32.totalorder %s24, 3
    %p75 = por %p73, %p74
    %p76 = scmp.ne.s32.totalorder %s67, %s68
    %p77 = scmp.eq.s32.totalorder %s24, 0
    %p78 = por %p76, %p77
    %p79 = scmp.ne.s32.totalorder %s67, %s68
    %p80 = scmp.eq.s32.totalorder %s25, 3
    %p81 = por %p79, %p80
    %p83 = scmp.ne.s32.totalorder %s68, %s82
    %p84 = scmp.eq.s32.totalorder %s25, 0
    %p85 = por %p83, %p84
    %s87 = sadd.s32 %s86, 1
    %p90 = scmp.eq.s32.totalorder %s19, 3
    %p91 = scmp.ne.s32.totalorder %s86, %s88
    %p92 = scmp.eq.s32.totalorder %s19, 0
    %p93 = por %p91, %p92
    %p94 = scmp.ne.s32.totalorder %s86, %s88
    %p95 = scmp.eq.s32.totalorder %s24, 3
    %p96 = por %p94, %p95
    %p97 = scmp.ne.s32.totalorder %s88, %s89
    %p98 = scmp.eq.s32.totalorder %s24, 0
    %p99 = por %p97, %p98
    %p100 = scmp.ne.s32.totalorder %s88, %s89
    %p101 = scmp.eq.s32.totalorder %s25, 3
    %p102 = por %p100, %p101
    %p104 = scmp.ne.s32.totalorder %s89, %s103
    %p105 = scmp.eq.s32.totalorder %s25, 0
    %p106 = por %p104, %p105
    %s107 = ssub.s32 %s27, %s34
    %p108 = scmp.eq.s32.totalorder %s107, 0
    %s110 = sadd.s32 %s109, 1
    %s111 = scalar_select %p108, %s109, %s110
    %p114 = pneg %p108
    %p115 = scmp.eq.s32.totalorder %s19, 3
    %p116 = por %p114, %p115
    %p117 = scmp.ne.s32.totalorder %s109, %s112
    %p118 = scmp.eq.s32.totalorder %s19, 0
    %p119 = por %p117, %p118
    %p120 = scmp.ne.s32.totalorder %s109, %s112
    %p121 = scmp.eq.s32.totalorder %s24, 3
    %p122 = por %p120, %p121
    %p123 = scmp.ne.s32.totalorder %s112, %s113
    %p124 = scmp.eq.s32.totalorder %s24, 0
    %p125 = por %p123, %p124
    %p126 = scmp.ne.s32.totalorder %s112, %s113
    %p127 = scmp.eq.s32.totalorder %s25, 3
    %p128 = por %p126, %p127
    %p130 = scmp.ne.s32.totalorder %s113, %s129
    %p131 = scmp.eq.s32.totalorder %s25, 0
    %p132 = por %p130, %p131
    %s133 = ssub.s32 %s27, %s34
    %p134 = scmp.eq.s32.totalorder %s133, 0
    %s136 = sadd.s32 %s135, 1
    %s137 = scalar_select %p134, %s135, %s136
    %p140 = pneg %p134
    %p141 = scmp.eq.s32.totalorder %s19, 3
    %p142 = por %p140, %p141
    %p143 = scmp.ne.s32.totalorder %s135, %s138
    %p144 = scmp.eq.s32.totalorder %s19, 0
    %p145 = por %p143, %p144
    %p146 = scmp.ne.s32.totalorder %s135, %s138
    %p147 = scmp.eq.s32.totalorder %s24, 3
    %p148 = por %p146, %p147
    %p149 = scmp.ne.s32.totalorder %s138, %s139
    %p150 = scmp.eq.s32.totalorder %s24, 0
    %p151 = por %p149, %p150
    %p152 = scmp.ne.s32.totalorder %s138, %s139
    %p153 = scmp.eq.s32.totalorder %s25, 3
    %p154 = por %p152, %p153
    %p156 = scmp.ne.s32.totalorder %s139, %s155
    %p157 = scmp.eq.s32.totalorder %s25, 0
    %p158 = por %p156, %p157
    %s159 = ssub.s32 %s27, %s34
    %p160 = scmp.eq.s32.totalorder %s159, 0
    %s162 = sadd.s32 %s161, 1
    %s163 = scalar_select %p160, %s161, %s162
    %p166 = pneg %p160
    %p167 = scmp.eq.s32.totalorder %s19, 3
    %p168 = por %p166, %p167
    %p169 = scmp.ne.s32.totalorder %s161, %s164
    %p170 = scmp.eq.s32.totalorder %s19, 0
    %p171 = por %p169, %p170
    %p172 = scmp.ne.s32.totalorder %s161, %s164
    %p173 = scmp.eq.s32.totalorder %s24, 3
    %p174 = por %p172, %p173
    %p175 = scmp.ne.s32.totalorder %s164, %s165
    %p176 = scmp.eq.s32.totalorder %s24, 0
    %p177 = por %p175, %p176
    %p178 = scmp.ne.s32.totalorder %s164, %s165
    %p179 = scmp.eq.s32.totalorder %s25, 3
    %p180 = por %p178, %p179
    %p182 = scmp.ne.s32.totalorder %s165, %s181
    %p183 = scmp.eq.s32.totalorder %s25, 0
    %p184 = por %p182, %p183
    %s185 = ssub.s32 %s27, %s34
    %p186 = scmp.eq.s32.totalorder %s185, 0
    %s188 = sadd.s32 %s187, 1
    %s189 = scalar_select %p186, %s187, %s188
    %p192 = pneg %p186
    %p193 = scmp.eq.s32.totalorder %s19, 3
    %p194 = por %p192, %p193
    %p195 = scmp.ne.s32.totalorder %s187, %s190
    %p196 = scmp.eq.s32.totalorder %s19, 0
    %p197 = por %p195, %p196
    %p198 = scmp.ne.s32.totalorder %s187, %s190
    %p199 = scmp.eq.s32.totalorder %s24, 3
    %p200 = por %p198, %p199
    %p201 = scmp.ne.s32.totalorder %s190, %s191
    %p202 = scmp.eq.s32.totalorder %s24, 0
    %p203 = por %p201, %p202
    %p204 = scmp.ne.s32.totalorder %s190, %s191
    %p205 = scmp.eq.s32.totalorder %s25, 3
    %p206 = por %p204, %p205
    %p208 = scmp.ne.s32.totalorder %s191, %s207
    %p209 = scmp.eq.s32.totalorder %s25, 0
    %p210 = por %p208, %p209
    %s211 = ssub.s32 %s27, %s34
    %p212 = scmp.eq.s32.totalorder %s211, 0
    %s214 = sadd.s32 %s213, 1
    %s215 = scalar_select %p212, %s213, %s214
    %p218 = pneg %p212
    %p219 = scmp.eq.s32.totalorder %s19, 3
    %p220 = por %p218, %p219
    %p221 = scmp.ne.s32.totalorder %s213, %s216
    %p222 = scmp.eq.s32.totalorder %s19, 0
    %p223 = por %p221, %p222
    %p224 = scmp.ne.s32.totalorder %s213, %s216
    %p225 = scmp.eq.s32.totalorder %s24, 3
    %p226 = por %p224, %p225
    %p227 = scmp.ne.s32.totalorder %s216, %s217
    %p228 = scmp.eq.s32.totalorder %s24, 0
    %p229 = por %p227, %p228
    %p230 = scmp.ne.s32.totalorder %s216, %s217
    %p231 = scmp.eq.s32.totalorder %s25, 3
    %p232 = por %p230, %p231
    %p234 = scmp.ne.s32.totalorder %s217, %s233
    %p235 = scmp.eq.s32.totalorder %s25, 0
    %p236 = por %p234, %p235
    %s237 = ssub.s32 %s27, %s34
    %p238 = scmp.eq.s32.totalorder %s237, 0
    %s240 = sadd.s32 %s239, 1
    %s241 = scalar_select %p238, %s239, %s240
    %p244 = pneg %p238
    %p245 = scmp.eq.s32.totalorder %s19, 3
    %p246 = por %p244, %p245
    %p247 = scmp.ne.s32.totalorder %s239, %s242
    %p248 = scmp.eq.s32.totalorder %s19, 0
    %p249 = por %p247, %p248
    %p250 = scmp.ne.s32.totalorder %s239, %s242
    %p251 = scmp.eq.s32.totalorder %s24, 3
    %p252 = por %p250, %p251
    %p253 = scmp.ne.s32.totalorder %s242, %s243
    %p254 = scmp.eq.s32.totalorder %s24, 0
    %p255 = por %p253, %p254
    %p256 = scmp.ne.s32.totalorder %s242, %s243
    %p257 = scmp.eq.s32.totalorder %s25, 3
    %p258 = por %p256, %p257
    %p260 = scmp.ne.s32.totalorder %s243, %s259
    %p261 = scmp.eq.s32.totalorder %s25, 0
    %p262 = por %p260, %p261
    %s263 = ssub.s32 %s27, %s34
    %p264 = scmp.eq.s32.totalorder %s263, 0
    %s266 = sadd.s32 %s265, 1
    %s267 = scalar_select %p264, %s265, %s266
    %p270 = pneg %p264
    %p271 = scmp.eq.s32.totalorder %s19, 3
    %p272 = por %p270, %p271
    %p273 = scmp.ne.s32.totalorder %s265, %s268
    %p274 = scmp.eq.s32.totalorder %s19, 0
    %p275 = por %p273, %p274
    %p276 = scmp.ne.s32.totalorder %s265, %s268
    %p277 = scmp.eq.s32.totalorder %s24, 3
    %p278 = por %p276, %p277
    %p279 = scmp.ne.s32.totalorder %s268, %s269
    %p280 = scmp.eq.s32.totalorder %s24, 0
    %p281 = por %p279, %p280
    %p282 = scmp.ne.s32.totalorder %s268, %s269
    %p283 = scmp.eq.s32.totalorder %s25, 3
    %p284 = por %p282, %p283
    %p286 = scmp.ne.s32.totalorder %s269, %s285
    %p287 = scmp.eq.s32.totalorder %s25, 0
    %p288 = por %p286, %p287
    %s289 = ssub.s32 %s27, %s34
    %p290 = scmp.eq.s32.totalorder %s289, 0
    %s292 = sadd.s32 %s291, 1
    %s293 = scalar_select %p290, %s291, %s292
    %p296 = pneg %p290
    %p297 = scmp.eq.s32.totalorder %s19, 3
    %p298 = por %p296, %p297
    %p299 = scmp.ne.s32.totalorder %s291, %s294
    %p300 = scmp.eq.s32.totalorder %s19, 0
    %p301 = por %p299, %p300
    %p302 = scmp.ne.s32.totalorder %s291, %s294
    %p303 = scmp.eq.s32.totalorder %s24, 3
    %p304 = por %p302, %p303
    %p305 = scmp.ne.s32.totalorder %s294, %s295
    %p306 = scmp.eq.s32.totalorder %s24, 0
    %p307 = por %p305, %p306
    %p308 = scmp.ne.s32.totalorder %s294, %s295
    %p309 = scmp.eq.s32.totalorder %s25, 3
    %p310 = por %p308, %p309
    %p312 = scmp.ne.s32.totalorder %s295, %s311
    %p313 = scmp.eq.s32.totalorder %s25, 0
    %p314 = por %p312, %p313
    %s316 = sadd.s32 %s315, 1
    %p319 = scmp.eq.s32.totalorder %s19, 3
    %p320 = scmp.ne.s32.totalorder %s315, %s317
    %p321 = scmp.eq.s32.totalorder %s19, 0
    %p322 = por %p320, %p321
    %p323 = scmp.ne.s32.totalorder %s315, %s317
    %p324 = scmp.eq.s32.totalorder %s24, 3
    %p325 = por %p323, %p324
    %p326 = scmp.ne.s32.totalorder %s317, %s318
    %p327 = scmp.eq.s32.totalorder %s24, 0
    %p328 = por %p326, %p327
    %p329 = scmp.ne.s32.totalorder %s317, %s318
    %p330 = scmp.eq.s32.totalorder %s25, 3
    %p331 = por %p329, %p330
    %p333 = scmp.ne.s32.totalorder %s318, %s332
    %p334 = scmp.eq.s32.totalorder %s25, 0
    %p335 = por %p333, %p334
    %s337 = sadd.s32 %s336, 1
    %p340 = scmp.eq.s32.totalorder %s19, 3
    %p341 = scmp.ne.s32.totalorder %s336, %s338
    %p342 = scmp.eq.s32.totalorder %s19, 0
    %p343 = por %p341, %p342
    %p344 = scmp.ne.s32.totalorder %s336, %s338
    %p345 = scmp.eq.s32.totalorder %s24, 3
    %p346 = por %p344, %p345
    %p347 = scmp.ne.s32.totalorder %s338, %s339
    %p348 = scmp.eq.s32.totalorder %s24, 0
    %p349 = por %p347, %p348
    %p350 = scmp.ne.s32.totalorder %s338, %s339
    %p351 = scmp.eq.s32.totalorder %s25, 3
    %p352 = por %p350, %p351
    %p354 = scmp.ne.s32.totalorder %s339, %s353
    %p355 = scmp.eq.s32.totalorder %s25, 0
    %p356 = por %p354, %p355
    %s357 = ssub.s32 %s26, %s38
    %p358 = scmp.eq.s32.totalorder %s357, 0
    %s360 = sadd.s32 %s359, 1
    %s361 = scalar_select %p358, %s359, %s360
    %p364 = pneg %p358
    %p365 = scmp.eq.s32.totalorder %s19, 3
    %p366 = por %p364, %p365
    %p367 = scmp.ne.s32.totalorder %s359, %s362
    %p368 = scmp.eq.s32.totalorder %s19, 0
    %p369 = por %p367, %p368
    %p370 = scmp.ne.s32.totalorder %s359, %s362
    %p371 = scmp.eq.s32.totalorder %s24, 3
    %p372 = por %p370, %p371
    %p373 = scmp.ne.s32.totalorder %s362, %s363
    %p374 = scmp.eq.s32.totalorder %s24, 0
    %p375 = por %p373, %p374
    %p376 = scmp.ne.s32.totalorder %s362, %s363
    %p377 = scmp.eq.s32.totalorder %s25, 3
    %p378 = por %p376, %p377
    %p380 = scmp.ne.s32.totalorder %s363, %s379
    %p381 = scmp.eq.s32.totalorder %s25, 0
    %p382 = por %p380, %p381
    %p383 = scmp.le.s32.totalorder 1, %s19
    %p384 = scmp.lt.s32.totalorder %s19, 5
    %p385 = pnand %p383, %p384
    %p386 = pneg %p385
    // Predicated region
    $region9: #{tpu_custom_call.1} parent=5 // pred_check
      _
    $region10: #{tpu_custom_call.1} parent=5 // pred_check_branch
      %388 = sbr.rel (%p385) target = $region12
    $region11: #{tpu_custom_call.1} parent=5 // pred_region
      %s389 = ssub.s32 %s19, 1
      // Predicated region
      $region13: #{tpu_custom_call.1} parent=11 // pred_check
        %p390 = pneg %p78
      $region14: #{tpu_custom_call.1} parent=11 // pred_check_branch
        %392 = sbr.rel (%p390) target = $region16
      $region15: #{tpu_custom_call.1} parent=11 // pred_region
        _
      $region16: #{tpu_custom_call.1} parent=11 // pred_fallthru
        _
      // Predicated region
      $region17: #{tpu_custom_call.1} parent=11 // pred_check
        %p393 = pneg %p99
      $region18: #{tpu_custom_call.1} parent=11 // pred_check_branch
        %395 = sbr.rel (%p393) target = $region20
      $region19: #{tpu_custom_call.1} parent=11 // pred_region
        _
      $region20: #{tpu_custom_call.1} parent=11 // pred_fallthru
        _
      // Predicated region
      $region21: #{tpu_custom_call.1} parent=11 // pred_check
        %p396 = pneg %p328
      $region22: #{tpu_custom_call.1} parent=11 // pred_check_branch
        %398 = sbr.rel (%p396) target = $region24
      $region23: #{tpu_custom_call.1} parent=11 // pred_region
        _
      $region24: #{tpu_custom_call.1} parent=11 // pred_fallthru
        _
      // Predicated region
      $region25: #{tpu_custom_call.1} parent=11 // pred_check
        %p399 = pneg %p349
      $region26: #{tpu_custom_call.1} parent=11 // pred_check_branch
        %401 = sbr.rel (%p399) target = $region28
      $region27: #{tpu_custom_call.1} parent=11 // pred_region
        _
      $region28: #{tpu_custom_call.1} parent=11 // pred_fallthru
        _
    $region12: #{tpu_custom_call.1} parent=5 // pred_fallthru
      _
    %p402 = scmp.lt.s32.totalorder %s19, 4
    // Predicated region
    $region29: #{tpu_custom_call.1} parent=5 // pred_check
      %p403 = pneg %p402
    $region30: #{tpu_custom_call.1} parent=5 // pred_check_branch
      %405 = sbr.rel (%p403) target = $region32
    $region31: #{tpu_custom_call.1} parent=5 // pred_region
      // Predicated region
      $region33: #{tpu_custom_call.1} parent=31 // pred_check
        %p406 = pneg %p51
      $region34: #{tpu_custom_call.1} parent=31 // pred_check_branch
        %408 = sbr.rel (%p406) target = $region36
      $region35: #{tpu_custom_call.1} parent=31 // pred_region
        %p409 = scmp.lt.s32.totalorder %s26, 1
        %s410 = scalar_select %p409, %s26, 1
        %s411 = smul.addr %s410, 8
        %s412 = scalar_lea.vmem %s0, %s411
      $region36: #{tpu_custom_call.1} parent=31 // pred_fallthru
        _
      // Predicated region
      $region37: #{tpu_custom_call.1} parent=31 // pred_check
        %p413 = pneg %p119
      $region38: #{tpu_custom_call.1} parent=31 // pred_check_branch
        %415 = sbr.rel (%p413) target = $region40
      $region39: #{tpu_custom_call.1} parent=31 // pred_region
        %p416 = scmp.lt.s32.totalorder %s27, 1
        %s417 = scalar_select %p416, %s27, 1
        %s418 = smul.addr %s417, 2
        %s419 = smul.addr %s418, 4
        %s420 = scalar_lea.vmem %s3, %s419
      $region40: #{tpu_custom_call.1} parent=31 // pred_fallthru
        _
      // Predicated region
      $region41: #{tpu_custom_call.1} parent=31 // pred_check
        %p421 = pneg %p145
      $region42: #{tpu_custom_call.1} parent=31 // pred_check_branch
        %423 = sbr.rel (%p421) target = $region44
      $region43: #{tpu_custom_call.1} parent=31 // pred_region
        %p424 = scmp.lt.s32.totalorder %s27, 1
        %s425 = scalar_select %p424, %s27, 1
        %s426 = scalar_lea.vmem %s4, %s425
      $region44: #{tpu_custom_call.1} parent=31 // pred_fallthru
        _
      // Predicated region
      $region45: #{tpu_custom_call.1} parent=31 // pred_check
        %p427 = pneg %p171
      $region46: #{tpu_custom_call.1} parent=31 // pred_check_branch
        %429 = sbr.rel (%p427) target = $region48
      $region47: #{tpu_custom_call.1} parent=31 // pred_region
        %p430 = scmp.lt.s32.totalorder %s27, 1
        %s431 = scalar_select %p430, %s27, 1
        %s432 = smul.addr %s431, 16
        %s433 = smul.addr %s432, 4
        %s434 = scalar_lea.vmem %s5, %s433
      $region48: #{tpu_custom_call.1} parent=31 // pred_fallthru
        _
      // Predicated region
      $region49: #{tpu_custom_call.1} parent=31 // pred_check
        %p435 = pneg %p197
      $region50: #{tpu_custom_call.1} parent=31 // pred_check_branch
        %437 = sbr.rel (%p435) target = $region52
      $region51: #{tpu_custom_call.1} parent=31 // pred_region
        %p438 = scmp.lt.s32.totalorder %s27, 1
        %s439 = scalar_select %p438, %s27, 1
        %s440 = scalar_lea.vmem %s6, %s439
      $region52: #{tpu_custom_call.1} parent=31 // pred_fallthru
        _
      // Predicated region
      $region53: #{tpu_custom_call.1} parent=31 // pred_check
        %p441 = pneg %p223
      $region54: #{tpu_custom_call.1} parent=31 // pred_check_branch
        %443 = sbr.rel (%p441) target = $region56
      $region55: #{tpu_custom_call.1} parent=31 // pred_region
        %p444 = scmp.lt.s32.totalorder %s27, 1
        %s445 = scalar_select %p444, %s27, 1
        %s446 = smul.addr %s445, 16
        %s447 = smul.addr %s446, 4
        %s448 = scalar_lea.vmem %s7, %s447
      $region56: #{tpu_custom_call.1} parent=31 // pred_fallthru
        _
      // Predicated region
      $region57: #{tpu_custom_call.1} parent=31 // pred_check
        %p449 = pneg %p249
      $region58: #{tpu_custom_call.1} parent=31 // pred_check_branch
        %451 = sbr.rel (%p449) target = $region60
      $region59: #{tpu_custom_call.1} parent=31 // pred_region
        %p452 = scmp.lt.s32.totalorder %s27, 1
        %s453 = scalar_select %p452, %s27, 1
        %s454 = smul.addr %s453, 16
        %s455 = smul.addr %s454, 8
        %s456 = scalar_lea.vmem %s8, %s455
      $region60: #{tpu_custom_call.1} parent=31 // pred_fallthru
        _
      // Predicated region
      $region61: #{tpu_custom_call.1} parent=31 // pred_check
        %p457 = pneg %p275
      $region62: #{tpu_custom_call.1} parent=31 // pred_check_branch
        %459 = sbr.rel (%p457) target = $region64
      $region63: #{tpu_custom_call.1} parent=31 // pred_region
        %p460 = scmp.lt.s32.totalorder %s27, 1
        %s461 = scalar_select %p460, %s27, 1
        %s462 = smul.addr %s461, 4
        %s463 = scalar_lea.vmem %s9, %s462
      $region64: #{tpu_custom_call.1} parent=31 // pred_fallthru
        _
      // Predicated region
      $region65: #{tpu_custom_call.1} parent=31 // pred_check
        %p464 = pneg %p301
      $region66: #{tpu_custom_call.1} parent=31 // pred_check_branch
        %466 = sbr.rel (%p464) target = $region68
      $region67: #{tpu_custom_call.1} parent=31 // pred_region
        %p467 = scmp.lt.s32.totalorder %s27, 1
        %s468 = scalar_select %p467, %s27, 1
        %s469 = smul.addr %s468, 8
        %s470 = scalar_lea.vmem %s10, %s469
      $region68: #{tpu_custom_call.1} parent=31 // pred_fallthru
        _
    $region32: #{tpu_custom_call.1} parent=5 // pred_fallthru
      _
    %p471 = scmp.le.s32.totalorder 1, %s19
    %p472 = scmp.lt.s32.totalorder %s19, 5
    %p473 = pnand %p471, %p472
    %p474 = pneg %p473
    // Predicated region
    $region69: #{tpu_custom_call.1} parent=5 // pred_check
      _
    $region70: #{tpu_custom_call.1} parent=5 // pred_check_branch
      %476 = sbr.rel (%p473) target = $region72
    $region71: #{tpu_custom_call.1} parent=5 // pred_region
      %s477 = ssub.s32 %s19, 1
      %p478 = scmp.lt.s32.totalorder %s28, 1
      %s479 = scalar_select %p478, %s28, 1
      %s480 = smul.addr %s479, 8
      %s481 = scalar_lea.vmem %s0, %s480
      %p482 = pneg %p57
      %p483 = pneg %p54
      %p484 = pneg %p78
      %p485 = pneg %p75
      %p486 = pneg %p99
      %p487 = pneg %p96
      %p488 = scmp.lt.s32.totalorder %s29, 1
      %s489 = scalar_select %p488, %s29, 1
      %s490 = smul.addr %s489, 2
      %s491 = smul.addr %s490, 4
      %s492 = scalar_lea.vmem %s3, %s491
      %p493 = pneg %p125
      %p494 = pneg %p122
      %p495 = scmp.lt.s32.totalorder %s29, 1
      %s496 = scalar_select %p495, %s29, 1
      %s497 = scalar_lea.vmem %s4, %s496
      %p498 = pneg %p151
      %p499 = pneg %p148
      %p500 = scmp.lt.s32.totalorder %s29, 1
      %s501 = scalar_select %p500, %s29, 1
      %s502 = smul.addr %s501, 16
      %s503 = smul.addr %s502, 4
      %s504 = scalar_lea.vmem %s5, %s503
      %p505 = pneg %p177
      %p506 = pneg %p174
      %p507 = scmp.lt.s32.totalorder %s29, 1
      %s508 = scalar_select %p507, %s29, 1
      %s509 = scalar_lea.vmem %s6, %s508
      %p510 = pneg %p203
      %p511 = pneg %p200
      %p512 = scmp.lt.s32.totalorder %s29, 1
      %s513 = scalar_select %p512, %s29, 1
      %s514 = smul.addr %s513, 16
      %s515 = smul.addr %s514, 4
      %s516 = scalar_lea.vmem %s7, %s515
      %p517 = pneg %p229
      %p518 = pneg %p226
      %p519 = scmp.lt.s32.totalorder %s29, 1
      %s520 = scalar_select %p519, %s29, 1
      %s521 = smul.addr %s520, 16
      %s522 = smul.addr %s521, 8
      %s523 = scalar_lea.vmem %s8, %s522
      %p524 = pneg %p255
      %p525 = pneg %p252
      %p526 = scmp.lt.s32.totalorder %s29, 1
      %s527 = scalar_select %p526, %s29, 1
      %s528 = smul.addr %s527, 4
      %s529 = scalar_lea.vmem %s9, %s528
      %p530 = pneg %p281
      %p531 = pneg %p278
      %p532 = scmp.lt.s32.totalorder %s29, 1
      %s533 = scalar_select %p532, %s29, 1
      %s534 = smul.addr %s533, 8
      %s535 = scalar_lea.vmem %s10, %s534
      %p536 = pneg %p307
      %p537 = pneg %p304
      %p538 = pneg %p328
      %p539 = pneg %p325
      %p540 = pneg %p349
      %p541 = pneg %p346
      %p542 = pneg %p375
      %p543 = pneg %p372
      %p544 = scmp.lt.s32.totalorder %s28, 1
      %s545 = scalar_select %p544, %s28, 1
      %s546 = smul.addr %s545, 8
      %s547 = scalar_lea.vmem %s13, %s546
      %p548 = scmp.lt.s32.totalorder %s28, 1
      %s549 = scalar_select %p548, %s28, 1
      %s550 = smul.addr %s549, 8
      %s551 = scalar_lea.vmem %s0, %s550
      %p552 = scmp.lt.s32.totalorder %s29, 1
      %s553 = scalar_select %p552, %s29, 1
      %s554 = smul.addr %s553, 2
      %s555 = smul.addr %s554, 4
      %s556 = scalar_lea.vmem %s3, %s555
      %p557 = scmp.lt.s32.totalorder %s29, 1
      %s558 = scalar_select %p557, %s29, 1
      %s559 = scalar_lea.vmem %s4, %s558
      %p560 = scmp.lt.s32.totalorder %s29, 1
      %s561 = scalar_select %p560, %s29, 1
      %s562 = smul.addr %s561, 16
      %s563 = smul.addr %s562, 4
      %s564 = scalar_lea.vmem %s5, %s563
      %p565 = scmp.lt.s32.totalorder %s29, 1
      %s566 = scalar_select %p565, %s29, 1
      %s567 = scalar_lea.vmem %s6, %s566
      %p568 = scmp.lt.s32.totalorder %s29, 1
      %s569 = scalar_select %p568, %s29, 1
      %s570 = smul.addr %s569, 16
      %s571 = smul.addr %s570, 4
      %s572 = scalar_lea.vmem %s7, %s571
      %p573 = scmp.lt.s32.totalorder %s29, 1
      %s574 = scalar_select %p573, %s29, 1
      %s575 = smul.addr %s574, 16
      %s576 = smul.addr %s575, 8
      %s577 = scalar_lea.vmem %s8, %s576
      %p578 = scmp.lt.s32.totalorder %s29, 1
      %s579 = scalar_select %p578, %s29, 1
      %s580 = smul.addr %s579, 4
      %s581 = scalar_lea.vmem %s9, %s580
      %p582 = scmp.lt.s32.totalorder %s29, 1
      %s583 = scalar_select %p582, %s29, 1
      %s584 = smul.addr %s583, 8
      %s585 = scalar_lea.vmem %s10, %s584
      %p586 = scmp.lt.s32.totalorder %s28, 1
      %s587 = scalar_select %p586, %s28, 1
      %s588 = smul.addr %s587, 8
      %s589 = scalar_lea.vmem %s13, %s588
      %p591 = scmp.eq.s32.totalorder %s29, 0
      // Predicated region
      $region73: #{tpu_custom_call.1} parent=71 // pred_check
        %p592 = pneg %p591
      $region74: #{tpu_custom_call.1} parent=71 // pred_check_branch
        %594 = sbr.rel (%p592) target = $region76
      $region75: #{tpu_custom_call.1} parent=71 // pred_region
        %v595 = vld [vmem:[%s551] sm:$0xff]
        %vm596 = vcmask 130048
        %v597 = vsel %vm596, %v595, 0.0
        %598 = vadd.xlane.f32.xlu0 %v597
        %v599 = vpop.xlane.xlu0 %598
        %v600 = vrcp.pop 16.0
        %v601 = vmul.f32 %v599, %v600
        %v602 = vsub.f32 %v595, %v601
        %v603 = vmul.f32 %v602, %v602
        %v604 = vsel %vm596, %v603, 0.0
        %605 = vadd.xlane.f32.xlu0 %v604
        %v606 = vpop.xlane.xlu0 %605
        %v607 = vmul.f32 %v606, %v600
        %v608 = vadd.f32 %v607, 1e-05
        %v609 = vrsqrt.pop %v608
        %v610 = vmul.f32 %v602, %v609
        %v611 = vld [vmem:[%s1] sm:$0xff]
        %613 = vset.pattern.permute.xlu0 0
        %614 = vperm.xlu0 %613, %v611
        %v615 = vpop.permute.xlu0 %614
        %v617 = vmul.f32 %v610, %v615
        %v618 = vld [vmem:[%s2] sm:$0xff]
        %620 = vset.pattern.permute.xlu0 0
        %621 = vperm.xlu0 %620, %v618
        %v622 = vpop.permute.xlu0 %621
        %v624 = vadd.f32 %v617, %v622
        %625 = vst.msk [vmem:[#allocation2] sm:$0xff] %vm596, %v624
      $region76: #{tpu_custom_call.1} parent=71 // pred_fallthru
        _
      %v626 = vld [vmem:[#allocation2] sm:$0xff]
      %v627 = vpack.c.bf16 %v626, %v626
      %v628 = vld [vmem:[%s556] sm:$0xf]
      %v629 = vld [vmem:[%s556 + $0x4] sm:$0xf]
      %v630 = vld [vmem:[%s559] sm:$0x1]
      %v632 = vlaneseq
      %v633 = vshrl.u32 %v632, 7
      %v634 = vsub.s32 0, %v633
      %v635 = vrot.slane %v630, %v634
      %v639 = vunpack.c.l.b16 %v628
      %v640 = vunpack.c.l.b16 %v629
      %v641 = vpack.c.b16 %v640, %v639
      %vm643 = vcmask 130048
      %v645 = vsel %vm643, %v627, 0
      %647 = vmatprep.subr.bf16.mxu0 0
      %648 = vmatpush1.bf16.msra.mxu0 %v641
      %649 = vmatprep.subr.bf16.mxu0 0
      %650 = vmatpush1.bf16.msra.mxu0 0
      %651 = vmatprep.subr.bf16.mxu0 0
      %652 = vmatpush1.bf16.msra.mxu0 0
      %653 = vmatprep.subr.bf16.mxu0 0
      %654 = vmatpush1.bf16.msra.mxu0 0
      %655 = vmatprep.subr.bf16.mxu0 0
      %656 = vmatpush1.bf16.msra.mxu0 0
      %657 = vmatprep.subr.bf16.mxu0 0
      %658 = vmatpush1.bf16.msra.mxu0 0
      %659 = vmatprep.subr.bf16.mxu0 0
      %660 = vmatpush1.bf16.msra.mxu0 0
      %661 = vmatprep.subr.bf16.mxu0 0
      %662 = vmatpush1.bf16.msra.mxu0 0
      %663 = vmatprep.subr.bf16.mxu0 0
      %664 = vmatpush1.bf16.msra.mxu0 0
      %665 = vmatprep.subr.bf16.mxu0 0
      %666 = vmatpush1.bf16.msra.mxu0 0
      %667 = vmatprep.subr.bf16.mxu0 0
      %668 = vmatpush1.bf16.msra.mxu0 0
      %669 = vmatprep.subr.bf16.mxu0 0
      %670 = vmatpush1.bf16.msra.mxu0 0
      %671 = vmatprep.subr.bf16.mxu0 0
      %672 = vmatpush1.bf16.msra.mxu0 0
      %673 = vmatprep.subr.bf16.mxu0 0
      %674 = vmatpush1.bf16.msra.mxu0 0
      %675 = vmatprep.subr.bf16.mxu0 0
      %676 = vmatpush1.bf16.msra.mxu0 0
      %677 = vmatprep.subr.bf16.mxu0 0
      %678 = vmatpush1.bf16.msra.mxu0 0
      %679 = vmatprep.mubr.bf16.mxu0 0
      %680 = vmatmul.mubr.bf16.gmra.mrb[0].mxu0 %v645
      %v681 = vpop.f32.mrb[0].mxu0
      %v682 = vadd.f32 %v635, %v681
      %v683 = vpop.f32.mrb[0].mxu0
      %v684 = vpop.f32.mrb[0].mxu0
      %v685 = vpop.f32.mrb[0].mxu0
      %686 = vdwg.mxu0
      %v687 = vmul.f32 %v682, 0.5
      %v688 = vmul.f32 %v682, 0.044715
      %v689 = vmul.f32 %v688, %v682
      %v690 = vmul.f32 %v689, %v682
      %v691 = vadd.f32 %v682, %v690
      %v692 = vmul.f32 %v691, 0.7978846
      %v693 = vtanh.pop %v692
      %v694 = vadd.f32 %v693, 1.0
      %v695 = vmul.f32 %v687, %v694
      %v696 = vpack.c.bf16 %v695, %v695
      %v697 = vld [vmem:[%s564] sm:$0xf]
      %v698 = vld [vmem:[%s564 + $0x4] sm:$0xf]
      %v699 = vld [vmem:[%s564 + $0x8] sm:$0xf]
      %v700 = vld [vmem:[%s564 + $0xc] sm:$0xf]
      %v701 = vld [vmem:[%s564 + $0x10] sm:$0xf]
      %v702 = vld [vmem:[%s564 + $0x14] sm:$0xf]
      %v703 = vld [vmem:[%s564 + $0x18] sm:$0xf]
      %v704 = vld [vmem:[%s564 + $0x1c] sm:$0xf]
      %v705 = vld [vmem:[%s564 + $0x20] sm:$0xf]
      %v706 = vld [vmem:[%s564 + $0x24] sm:$0xf]
      %v707 = vld [vmem:[%s564 + $0x28] sm:$0xf]
      %v708 = vld [vmem:[%s564 + $0x2c] sm:$0xf]
      %v709 = vld [vmem:[%s564 + $0x30] sm:$0xf]
      %v710 = vld [vmem:[%s564 + $0x34] sm:$0xf]
      %v711 = vld [vmem:[%s564 + $0x38] sm:$0xf]
      %v712 = vld [vmem:[%s564 + $0x3c] sm:$0xf]
      %v729 = vunpack.c.l.b16 %v697
      %v730 = vunpack.c.l.b16 %v698
      %v731 = vunpack.c.l.b16 %v699
      %v732 = vunpack.c.l.b16 %v700
      %v733 = vunpack.c.l.b16 %v701
      %v734 = vunpack.c.l.b16 %v702
      %v735 = vunpack.c.l.b16 %v703
      %v736 = vunpack.c.l.b16 %v704
      %v737 = vunpack.c.l.b16 %v705
      %v738 = vunpack.c.l.b16 %v706
      %v739 = vunpack.c.l.b16 %v707
      %v740 = vunpack.c.l.b16 %v708
      %v741 = vunpack.c.l.b16 %v709
      %v742 = vunpack.c.l.b16 %v710
      %v743 = vunpack.c.l.b16 %v711
      %v744 = vunpack.c.l.b16 %v712
      %v745 = vpack.c.b16 %v730, %v729
      %v746 = vpack.c.b16 %v732, %v731
      %v747 = vpack.c.b16 %v734, %v733
      %v748 = vpack.c.b16 %v736, %v735
      %v749 = vpack.c.b16 %v738, %v737
      %v750 = vpack.c.b16 %v740, %v739
      %v751 = vpack.c.b16 %v742, %v741
      %v752 = vpack.c.b16 %v744, %v743
      %761 = vmatprep.subr.bf16.mxu0 0
      %762 = vmatpush1.bf16.msra.mxu0 %v745
      %763 = vmatprep.subr.bf16.mxu0 0
      %764 = vmatpush1.bf16.msra.mxu0 %v746
      %765 = vmatprep.subr.bf16.mxu0 0
      %766 = vmatpush1.bf16.msra.mxu0 %v747
      %767 = vmatprep.subr.bf16.mxu0 0
      %768 = vmatpush1.bf16.msra.mxu0 %v748
      %769 = vmatprep.subr.bf16.mxu0 0
      %770 = vmatpush1.bf16.msra.mxu0 %v749
      %771 = vmatprep.subr.bf16.mxu0 0
      %772 = vmatpush1.bf16.msra.mxu0 %v750
      %773 = vmatprep.subr.bf16.mxu0 0
      %774 = vmatpush1.bf16.msra.mxu0 %v751
      %775 = vmatprep.subr.bf16.mxu0 0
      %776 = vmatpush1.bf16.msra.mxu0 %v752
      %777 = vmatprep.subr.bf16.mxu0 0
      %778 = vmatpush1.bf16.msra.mxu0 0
      %779 = vmatprep.subr.bf16.mxu0 0
      %780 = vmatpush1.bf16.msra.mxu0 0
      %781 = vmatprep.subr.bf16.mxu0 0
      %782 = vmatpush1.bf16.msra.mxu0 0
      %783 = vmatprep.subr.bf16.mxu0 0
      %784 = vmatpush1.bf16.msra.mxu0 0
      %785 = vmatprep.subr.bf16.mxu0 0
      %786 = vmatpush1.bf16.msra.mxu0 0
      %787 = vmatprep.subr.bf16.mxu0 0
      %788 = vmatpush1.bf16.msra.mxu0 0
      %789 = vmatprep.subr.bf16.mxu0 0
      %790 = vmatpush1.bf16.msra.mxu0 0
      %791 = vmatprep.subr.bf16.mxu0 0
      %792 = vmatpush1.bf16.msra.mxu0 0
      %793 = vmatprep.mubr.bf16.mxu0 0
      %794 = vmatmul.mubr.bf16.gmra.mrb[0].mxu0 %v696
      %v795 = vpop.f32.mrb[0].mxu0
      %v796 = vadd.f32 0.0, %v795
      %v797 = vpop.f32.mrb[0].mxu0
      %v798 = vpop.f32.mrb[0].mxu0
      %v799 = vpop.f32.mrb[0].mxu0
      %800 = vdwg.mxu0
      %v801 = vadd.f32 %v626, %v796
      %v802 = vld [vmem:[%s567] sm:$0x1]
      %v804 = vlaneseq
      %v805 = vshrl.u32 %v804, 7
      %v806 = vsub.s32 0, %v805
      %v807 = vrot.slane %v802, %v806
      %v809 = vadd.f32 %v801, %v807
      %v810 = vld [vmem:[%s572] sm:$0xf]
      %v811 = vld [vmem:[%s572 + $0x4] sm:$0xf]
      %v812 = vld [vmem:[%s572 + $0x8] sm:$0xf]
      %v813 = vld [vmem:[%s572 + $0xc] sm:$0xf]
      %v814 = vld [vmem:[%s572 + $0x10] sm:$0xf]
      %v815 = vld [vmem:[%s572 + $0x14] sm:$0xf]
      %v816 = vld [vmem:[%s572 + $0x18] sm:$0xf]
      %v817 = vld [vmem:[%s572 + $0x1c] sm:$0xf]
      %v818 = vld [vmem:[%s572 + $0x20] sm:$0xf]
      %v819 = vld [vmem:[%s572 + $0x24] sm:$0xf]
      %v820 = vld [vmem:[%s572 + $0x28] sm:$0xf]
      %v821 = vld [vmem:[%s572 + $0x2c] sm:$0xf]
      %v822 = vld [vmem:[%s572 + $0x30] sm:$0xf]
      %v823 = vld [vmem:[%s572 + $0x34] sm:$0xf]
      %v824 = vld [vmem:[%s572 + $0x38] sm:$0xf]
      %v825 = vld [vmem:[%s572 + $0x3c] sm:$0xf]
      %v826 = vld [vmem:[%s581] sm:$0xf]
      %v827 = vld [vmem:[%s577] sm:$0xff]
      %v828 = vld [vmem:[%s577 + $0x8] sm:$0xff]
      %v829 = vld [vmem:[%s577 + $0x10] sm:$0xff]
      %v830 = vld [vmem:[%s577 + $0x18] sm:$0xff]
      %v831 = vld [vmem:[%s577 + $0x20] sm:$0xff]
      %v832 = vld [vmem:[%s577 + $0x28] sm:$0xff]
      %v833 = vld [vmem:[%s577 + $0x30] sm:$0xff]
      %v834 = vld [vmem:[%s577 + $0x38] sm:$0xff]
      %v835 = vld [vmem:[%s577 + $0x40] sm:$0xff]
      %v836 = vld [vmem:[%s577 + $0x48] sm:$0xff]
      %v837 = vld [vmem:[%s577 + $0x50] sm:$0xff]
      %v838 = vld [vmem:[%s577 + $0x58] sm:$0xff]
      %v839 = vld [vmem:[%s577 + $0x60] sm:$0xff]
      %v840 = vld [vmem:[%s577 + $0x68] sm:$0xff]
      %v841 = vld [vmem:[%s577 + $0x70] sm:$0xff]
      %v842 = vld [vmem:[%s577 + $0x78] sm:$0xff]
      %v843 = vld [vmem:[%s585] sm:$0xff]
      %v844 = vpack.c.bf16 %v809, %v809
      %846 = vset.pattern.permute.xlu0 0
      %847 = vperm.xlu0 %846, %v827
      %v848 = vpop.permute.xlu0 %847
      %851 = vset.pattern.permute.xlu0 0
      %852 = vperm.xlu0 %851, %v828
      %v853 = vpop.permute.xlu0 %852
      %856 = vset.pattern.permute.xlu0 0
      %857 = vperm.xlu0 %856, %v829
      %v858 = vpop.permute.xlu0 %857
      %861 = vset.pattern.permute.xlu0 0
      %862 = vperm.xlu0 %861, %v830
      %v863 = vpop.permute.xlu0 %862
      %866 = vset.pattern.permute.xlu0 0
      %867 = vperm.xlu0 %866, %v831
      %v868 = vpop.permute.xlu0 %867
      %871 = vset.pattern.permute.xlu0 0
      %872 = vperm.xlu0 %871, %v832
      %v873 = vpop.permute.xlu0 %872
      %876 = vset.pattern.permute.xlu0 0
      %877 = vperm.xlu0 %876, %v833
      %v878 = vpop.permute.xlu0 %877
      %881 = vset.pattern.permute.xlu0 0
      %882 = vperm.xlu0 %881, %v834
      %v883 = vpop.permute.xlu0 %882
      %886 = vset.pattern.permute.xlu0 0
      %887 = vperm.xlu0 %886, %v835
      %v888 = vpop.permute.xlu0 %887
      %891 = vset.pattern.permute.xlu0 0
      %892 = vperm.xlu0 %891, %v836
      %v893 = vpop.permute.xlu0 %892
      %896 = vset.pattern.permute.xlu0 0
      %897 = vperm.xlu0 %896, %v837
      %v898 = vpop.permute.xlu0 %897
      %901 = vset.pattern.permute.xlu0 0
      %902 = vperm.xlu0 %901, %v838
      %v903 = vpop.permute.xlu0 %902
      %906 = vset.pattern.permute.xlu0 0
      %907 = vperm.xlu0 %906, %v839
      %v908 = vpop.permute.xlu0 %907
      %911 = vset.pattern.permute.xlu0 0
      %912 = vperm.xlu0 %911, %v840
      %v913 = vpop.permute.xlu0 %912
      %916 = vset.pattern.permute.xlu0 0
      %917 = vperm.xlu0 %916, %v841
      %v918 = vpop.permute.xlu0 %917
      %921 = vset.pattern.permute.xlu0 0
      %922 = vperm.xlu0 %921, %v842
      %v923 = vpop.permute.xlu0 %922
      %v941 = vunpack.c.l.b16 %v810
      %v942 = vunpack.c.l.b16 %v811
      %v943 = vunpack.c.l.b16 %v812
      %v944 = vunpack.c.l.b16 %v813
      %v945 = vunpack.c.l.b16 %v814
      %v946 = vunpack.c.l.b16 %v815
      %v947 = vunpack.c.l.b16 %v816
      %v948 = vunpack.c.l.b16 %v817
      %v949 = vunpack.c.l.b16 %v818
      %v950 = vunpack.c.l.b16 %v819
      %v951 = vunpack.c.l.b16 %v820
      %v952 = vunpack.c.l.b16 %v821
      %v953 = vunpack.c.l.b16 %v822
      %v954 = vunpack.c.l.b16 %v823
      %v955 = vunpack.c.l.b16 %v824
      %v956 = vunpack.c.l.b16 %v825
      %v957 = vpack.c.b16 %v942, %v941
      %v958 = vpack.c.b16 %v944, %v943
      %v959 = vpack.c.b16 %v946, %v945
      %v960 = vpack.c.b16 %v948, %v947
      %v961 = vpack.c.b16 %v950, %v949
      %v962 = vpack.c.b16 %v952, %v951
      %v963 = vpack.c.b16 %v954, %v953
      %v964 = vpack.c.b16 %v956, %v955
      %vm965 = vcmask 64512
      %v967 = vsel %vm965, %v957, 0
      %v970 = vsel %vm965, %v958, 0
      %v973 = vsel %vm965, %v959, 0
      %v976 = vsel %vm965, %v960, 0
      %v979 = vsel %vm965, %v961, 0
      %v982 = vsel %vm965, %v962, 0
      %v985 = vsel %vm965, %v963, 0
      %v988 = vsel %vm965, %v964, 0
      %vm990 = vcmask 1043456
      %v992 = vsel %vm990, %v844, 0
      %994 = vmatprep.subr.bf16.mxu0 0
      %995 = vmatpush1.bf16.msra.mxu0 %v992
      %996 = vmatprep.subr.bf16.mxu0 0
      %997 = vmatpush1.bf16.msra.mxu0 0
      %998 = vmatprep.subr.bf16.mxu0 0
      %999 = vmatpush1.bf16.msra.mxu0 0
      %1000 = vmatprep.subr.bf16.mxu0 0
      %1001 = vmatpush1.bf16.msra.mxu0 0
      %1002 = vmatprep.subr.bf16.mxu0 0
      %1003 = vmatpush1.bf16.msra.mxu0 0
      %1004 = vmatprep.subr.bf16.mxu0 0
      %1005 = vmatpush1.bf16.msra.mxu0 0
      %1006 = vmatprep.subr.bf16.mxu0 0
      %1007 = vmatpush1.bf16.msra.mxu0 0
      %1008 = vmatprep.subr.bf16.mxu0 0
      %1009 = vmatpush1.bf16.msra.mxu0 0
      %1010 = vmatprep.subr.bf16.mxu0 0
      %1011 = vmatpush1.bf16.msra.mxu0 0
      %1012 = vmatprep.subr.bf16.mxu0 0
      %1013 = vmatpush1.bf16.msra.mxu0 0
      %1014 = vmatprep.subr.bf16.mxu0 0
      %1015 = vmatpush1.bf16.msra.mxu0 0
      %1016 = vmatprep.subr.bf16.mxu0 0
      %1017 = vmatpush1.bf16.msra.mxu0 0
      %1018 = vmatprep.subr.bf16.mxu0 0
      %1019 = vmatpush1.bf16.msra.mxu0 0
      %1020 = vmatprep.subr.bf16.mxu0 0
      %1021 = vmatpush1.bf16.msra.mxu0 0
      %1022 = vmatprep.subr.bf16.mxu0 0
      %1023 = vmatpush1.bf16.msra.mxu0 0
      %1024 = vmatprep.subr.bf16.mxu0 0
      %1025 = vmatpush1.bf16.msra.mxu0 0
      %1026 = vmatprep.mubr.bf16.mxu0 0
      %1027 = vmatmul.mubr.bf16.gmra.mrb[0].mxu0 %v967
      %v1028 = vpop.f32.mrb[0].mxu0
      %v1029 = vadd.f32 %v848, %v1028
      %v1030 = vpop.f32.mrb[0].mxu0
      %v1031 = vpop.f32.mrb[0].mxu0
      %v1032 = vadd.f32 %v853, %v1031
      %v1033 = vpop.f32.mrb[0].mxu0
      %1034 = vmatprep.mubr.bf16.mxu0 0
      %1035 = vmatmul.mubr.bf16.gmra.mrb[0].mxu0 %v970
      %v1036 = vpop.f32.mrb[0].mxu0
      %v1037 = vadd.f32 %v858, %v1036
      %v1038 = vpop.f32.mrb[0].mxu0
      %v1039 = vpop.f32.mrb[0].mxu0
      %v1040 = vadd.f32 %v863, %v1039
      %v1041 = vpop.f32.mrb[0].mxu0
      %1042 = vmatprep.mubr.bf16.mxu0 0
      %1043 = vmatmul.mubr.bf16.gmra.mrb[0].mxu0 %v973
      %v1044 = vpop.f32.mrb[0].mxu0
      %v1045 = vadd.f32 %v868, %v1044
      %v1046 = vpop.f32.mrb[0].mxu0
      %v1047 = vpop.f32.mrb[0].mxu0
      %v1048 = vadd.f32 %v873, %v1047
      %v1049 = vpop.f32.mrb[0].mxu0
      %1050 = vmatprep.mubr.bf16.mxu0 0
      %1051 = vmatmul.mubr.bf16.gmra.mrb[0].mxu0 %v976
      %v1052 = vpop.f32.mrb[0].mxu0
      %v1053 = vadd.f32 %v878, %v1052
      %v1054 = vpop.f32.mrb[0].mxu0
      %v1055 = vpop.f32.mrb[0].mxu0
      %v1056 = vadd.f32 %v883, %v1055
      %v1057 = vpop.f32.mrb[0].mxu0
      %1058 = vmatprep.mubr.bf16.mxu0 0
      %1059 = vmatmul.mubr.bf16.gmra.mrb[0].mxu0 %v979
      %v1060 = vpop.f32.mrb[0].mxu0
      %v1061 = vadd.f32 %v888, %v1060
      %v1062 = vpop.f32.mrb[0].mxu0
      %v1063 = vpop.f32.mrb[0].mxu0
      %v1064 = vadd.f32 %v893, %v1063
      %v1065 = vpop.f32.mrb[0].mxu0
      %1066 = vmatprep.mubr.bf16.mxu0 0
      %1067 = vmatmul.mubr.bf16.gmra.mrb[0].mxu0 %v982
      %v1068 = vpop.f32.mrb[0].mxu0
      %v1069 = vadd.f32 %v898, %v1068
      %v1070 = vpop.f32.mrb[0].mxu0
      %v1071 = vpop.f32.mrb[0].mxu0
      %v1072 = vadd.f32 %v903, %v1071
      %v1073 = vpop.f32.mrb[0].mxu0
      %1074 = vmatprep.mubr.bf16.mxu0 0
      %1075 = vmatmul.mubr.bf16.gmra.mrb[0].mxu0 %v985
      %v1076 = vpop.f32.mrb[0].mxu0
      %v1077 = vadd.f32 %v908, %v1076
      %v1078 = vpop.f32.mrb[0].mxu0
      %v1079 = vpop.f32.mrb[0].mxu0
      %v1080 = vadd.f32 %v913, %v1079
      %v1081 = vpop.f32.mrb[0].mxu0
      %1082 = vmatprep.mubr.bf16.mxu0 0
      %1083 = vmatmul.mubr.bf16.gmra.mrb[0].mxu0 %v988
      %v1084 = vpop.f32.mrb[0].mxu0
      %v1085 = vadd.f32 %v918, %v1084
      %v1086 = vpop.f32.mrb[0].mxu0
      %v1087 = vpop.f32.mrb[0].mxu0
      %v1088 = vadd.f32 %v923, %v1087
      %v1089 = vpop.f32.mrb[0].mxu0
      %1090 = vdwg.mxu0
      %v1091 = vmul.f32 %v1029, 0.5
      %v1092 = vmul.f32 %v1032, 0.5
      %v1093 = vmul.f32 %v1037, 0.5
      %v1094 = vmul.f32 %v1040, 0.5
      %v1095 = vmul.f32 %v1045, 0.5
      %v1096 = vmul.f32 %v1048, 0.5
      %v1097 = vmul.f32 %v1053, 0.5
      %v1098 = vmul.f32 %v1056, 0.5
      %v1099 = vmul.f32 %v1061, 0.5
      %v1100 = vmul.f32 %v1064, 0.5
      %v1101 = vmul.f32 %v1069, 0.5
      %v1102 = vmul.f32 %v1072, 0.5
      %v1103 = vmul.f32 %v1077, 0.5
      %v1104 = vmul.f32 %v1080, 0.5
      %v1105 = vmul.f32 %v1085, 0.5
      %v1106 = vmul.f32 %v1088, 0.5
      %v1107 = vmul.f32 %v1029, 0.044715
      %v1108 = vmul.f32 %v1032, 0.044715
      %v1109 = vmul.f32 %v1037, 0.044715
      %v1110 = vmul.f32 %v1040, 0.044715
      %v1111 = vmul.f32 %v1045, 0.044715
      %v1112 = vmul.f32 %v1048, 0.044715
      %v1113 = vmul.f32 %v1053, 0.044715
      %v1114 = vmul.f32 %v1056, 0.044715
      %v1115 = vmul.f32 %v1061, 0.044715
      %v1116 = vmul.f32 %v1064, 0.044715
      %v1117 = vmul.f32 %v1069, 0.044715
      %v1118 = vmul.f32 %v1072, 0.044715
      %v1119 = vmul.f32 %v1077, 0.044715
      %v1120 = vmul.f32 %v1080, 0.044715
      %v1121 = vmul.f32 %v1085, 0.044715
      %v1122 = vmul.f32 %v1088, 0.044715
      %v1123 = vmul.f32 %v1107, %v1029
      %v1124 = vmul.f32 %v1108, %v1032
      %v1125 = vmul.f32 %v1109, %v1037
      %v1126 = vmul.f32 %v1110, %v1040
      %v1127 = vmul.f32 %v1111, %v1045
      %v1128 = vmul.f32 %v1112, %v1048
      %v1129 = vmul.f32 %v1113, %v1053
      %v1130 = vmul.f32 %v1114, %v1056
      %v1131 = vmul.f32 %v1115, %v1061
      %v1132 = vmul.f32 %v1116, %v1064
      %v1133 = vmul.f32 %v1117, %v1069
      %v1134 = vmul.f32 %v1118, %v1072
      %v1135 = vmul.f32 %v1119, %v1077
      %v1136 = vmul.f32 %v1120, %v1080
      %v1137 = vmul.f32 %v1121, %v1085
      %v1138 = vmul.f32 %v1122, %v1088
      %v1139 = vmul.f32 %v1123, %v1029
      %v1140 = vmul.f32 %v1124, %v1032
      %v1141 = vmul.f32 %v1125, %v1037
      %v1142 = vmul.f32 %v1126, %v1040
      %v1143 = vmul.f32 %v1127, %v1045
      %v1144 = vmul.f32 %v1128, %v1048
      %v1145 = vmul.f32 %v1129, %v1053
      %v1146 = vmul.f32 %v1130, %v1056
      %v1147 = vmul.f32 %v1131, %v1061
      %v1148 = vmul.f32 %v1132, %v1064
      %v1149 = vmul.f32 %v1133, %v1069
      %v1150 = vmul.f32 %v1134, %v1072
      %v1151 = vmul.f32 %v1135, %v1077
      %v1152 = vmul.f32 %v1136, %v1080
      %v1153 = vmul.f32 %v1137, %v1085
      %v1154 = vmul.f32 %v1138, %v1088
      %v1155 = vadd.f32 %v1029, %v1139
      %v1156 = vadd.f32 %v1032, %v1140
      %v1157 = vadd.f32 %v1037, %v1141
      %v1158 = vadd.f32 %v1040, %v1142
      %v1159 = vadd.f32 %v1045, %v1143
      %v1160 = vadd.f32 %v1048, %v1144
      %v1161 = vadd.f32 %v1053, %v1145
      %v1162 = vadd.f32 %v1056, %v1146
      %v1163 = vadd.f32 %v1061, %v1147
      %v1164 = vadd.f32 %v1064, %v1148
      %v1165 = vadd.f32 %v1069, %v1149
      %v1166 = vadd.f32 %v1072, %v1150
      %v1167 = vadd.f32 %v1077, %v1151
      %v1168 = vadd.f32 %v1080, %v1152
      %v1169 = vadd.f32 %v1085, %v1153
      %v1170 = vadd.f32 %v1088, %v1154
      %v1171 = vmul.f32 %v1155, 0.7978846
      %v1172 = vmul.f32 %v1156, 0.7978846
      %v1173 = vmul.f32 %v1157, 0.7978846
      %v1174 = vmul.f32 %v1158, 0.7978846
      %v1175 = vmul.f32 %v1159, 0.7978846
      %v1176 = vmul.f32 %v1160, 0.7978846
      %v1177 = vmul.f32 %v1161, 0.7978846
      %v1178 = vmul.f32 %v1162, 0.7978846
      %v1179 = vmul.f32 %v1163, 0.7978846
      %v1180 = vmul.f32 %v1164, 0.7978846
      %v1181 = vmul.f32 %v1165, 0.7978846
      %v1182 = vmul.f32 %v1166, 0.7978846
      %v1183 = vmul.f32 %v1167, 0.7978846
      %v1184 = vmul.f32 %v1168, 0.7978846
      %v1185 = vmul.f32 %v1169, 0.7978846
      %v1186 = vmul.f32 %v1170, 0.7978846
      %v1187 = vtanh.pop %v1171
      %v1188 = vtanh.pop %v1172
      %v1189 = vtanh.pop %v1173
      %v1190 = vtanh.pop %v1174
      %v1191 = vtanh.pop %v1175
      %v1192 = vtanh.pop %v1176
      %v1193 = vtanh.pop %v1177
      %v1194 = vtanh.pop %v1178
      %v1195 = vtanh.pop %v1179
      %v1196 = vtanh.pop %v1180
      %v1197 = vtanh.pop %v1181
      %v1198 = vtanh.pop %v1182
      %v1199 = vtanh.pop %v1183
      %v1200 = vtanh.pop %v1184
      %v1201 = vtanh.pop %v1185
      %v1202 = vtanh.pop %v1186
      %v1203 = vadd.f32 %v1187, 1.0
      %v1204 = vadd.f32 %v1188, 1.0
      %v1205 = vadd.f32 %v1189, 1.0
      %v1206 = vadd.f32 %v1190, 1.0
      %v1207 = vadd.f32 %v1191, 1.0
      %v1208 = vadd.f32 %v1192, 1.0
      %v1209 = vadd.f32 %v1193, 1.0
      %v1210 = vadd.f32 %v1194, 1.0
      %v1211 = vadd.f32 %v1195, 1.0
      %v1212 = vadd.f32 %v1196, 1.0
      %v1213 = vadd.f32 %v1197, 1.0
      %v1214 = vadd.f32 %v1198, 1.0
      %v1215 = vadd.f32 %v1199, 1.0
      %v1216 = vadd.f32 %v1200, 1.0
      %v1217 = vadd.f32 %v1201, 1.0
      %v1218 = vadd.f32 %v1202, 1.0
      %v1219 = vmul.f32 %v1091, %v1203
      %v1220 = vmul.f32 %v1092, %v1204
      %v1221 = vmul.f32 %v1093, %v1205
      %v1222 = vmul.f32 %v1094, %v1206
      %v1223 = vmul.f32 %v1095, %v1207
      %v1224 = vmul.f32 %v1096, %v1208
      %v1225 = vmul.f32 %v1097, %v1209
      %v1226 = vmul.f32 %v1098, %v1210
      %v1227 = vmul.f32 %v1099, %v1211
      %v1228 = vmul.f32 %v1100, %v1212
      %v1229 = vmul.f32 %v1101, %v1213
      %v1230 = vmul.f32 %v1102, %v1214
      %v1231 = vmul.f32 %v1103, %v1215
      %v1232 = vmul.f32 %v1104, %v1216
      %v1233 = vmul.f32 %v1105, %v1217
      %v1234 = vmul.f32 %v1106, %v1218
      %v1235 = vpack.c.bf16 %v1220, %v1219
      %v1236 = vpack.c.bf16 %v1222, %v1221
      %v1237 = vpack.c.bf16 %v1224, %v1223
      %v1238 = vpack.c.bf16 %v1226, %v1225
      %v1239 = vpack.c.bf16 %v1228, %v1227
      %v1240 = vpack.c.bf16 %v1230, %v1229
      %v1241 = vpack.c.bf16 %v1232, %v1231
      %v1242 = vpack.c.bf16 %v1234, %v1233
      %1243 = vmatprep.subr.bf16.mxu0 0
      %1244 = vmatpush1.bf16.msra.mxu0 %v1235
      %1245 = vmatprep.subr.bf16.mxu0 0
      %1246 = vmatpush1.bf16.msra.mxu0 %v1236
      %1247 = vmatprep.subr.bf16.mxu0 0
      %1248 = vmatpush1.bf16.msra.mxu0 %v1237
      %1249 = vmatprep.subr.bf16.mxu0 0
      %1250 = vmatpush1.bf16.msra.mxu0 %v1238
      %1251 = vmatprep.subr.bf16.mxu0 0
      %1252 = vmatpush1.bf16.msra.mxu0 %v1239
      %1253 = vmatprep.subr.bf16.mxu0 0
      %1254 = vmatpush1.bf16.msra.mxu0 %v1240
      %1255 = vmatprep.subr.bf16.mxu0 0
      %1256 = vmatpush1.bf16.msra.mxu0 %v1241
      %1257 = vmatprep.subr.bf16.mxu0 0
      %1258 = vmatpush1.bf16.msra.mxu0 %v1242
      %1259 = vmatprep.subr.bf16.mxu0 0
      %1260 = vmatpush1.bf16.msra.mxu0 0
      %1261 = vmatprep.subr.bf16.mxu0 0
      %1262 = vmatpush1.bf16.msra.mxu0 0
      %1263 = vmatprep.subr.bf16.mxu0 0
      %1264 = vmatpush1.bf16.msra.mxu0 0
      %1265 = vmatprep.subr.bf16.mxu0 0
      %1266 = vmatpush1.bf16.msra.mxu0 0
      %1267 = vmatprep.subr.bf16.mxu0 0
      %1268 = vmatpush1.bf16.msra.mxu0 0
      %1269 = vmatprep.subr.bf16.mxu0 0
      %1270 = vmatpush1.bf16.msra.mxu0 0
      %1271 = vmatprep.subr.bf16.mxu0 0
      %1272 = vmatpush1.bf16.msra.mxu0 0
      %1273 = vmatprep.subr.bf16.mxu0 0
      %1274 = vmatpush1.bf16.msra.mxu0 0
      %1275 = vmatprep.mubr.bf16.mxu0 0
      %1276 = vmatmul.mubr.bf16.gmra.mrb[0].mxu0 %v826
      %v1277 = vpop.f32.mrb[0].mxu0
      %v1278 = vadd.f32 0.0, %v1277
      %v1279 = vpop.f32.mrb[0].mxu0
      %v1280 = vpop.f32.mrb[0].mxu0
      %v1281 = vpop.f32.mrb[0].mxu0
      %1282 = vdwg.mxu0
      %v1283 = vadd.f32 %v809, %v1278
      %1285 = vset.pattern.permute.xlu0 0
      %1286 = vperm.xlu0 %1285, %v843
      %v1287 = vpop.permute.xlu0 %1286
      %v1289 = vadd.f32 %v1283, %v1287
      %1290 = vst.msk [vmem:[#allocation2] sm:$0xff] %vm643, %v1289
      %p1291 = scmp.eq.s32.totalorder %s29, 1
      // Predicated region
      $region77: #{tpu_custom_call.1} parent=71 // pred_check
        %p1292 = pneg %p1291
      $region78: #{tpu_custom_call.1} parent=71 // pred_check_branch
        %1294 = sbr.rel (%p1292) target = $region80
      $region79: #{tpu_custom_call.1} parent=71 // pred_region
        %v1295 = vld [vmem:[#allocation2] sm:$0xff]
        %v1296 = vpack.c.bf16 %v1295, %v1295
        %v1297 = vld [vmem:[%s11] sm:$0xf]
        %v1298 = vld [vmem:[%s11 + $0x4] sm:$0xf]
        %v1299 = vld [vmem:[%s12] sm:$0x1]
        %v1301 = vlaneseq
        %v1302 = vshrl.u32 %v1301, 7
        %v1303 = vsub.s32 0, %v1302
        %v1304 = vrot.slane %v1299, %v1303
        %v1308 = vunpack.c.l.b16 %v1297
        %v1309 = vunpack.c.l.b16 %v1298
        %v1310 = vpack.c.b16 %v1309, %v1308
        %v1313 = vsel %vm643, %v1296, 0
        %1315 = vmatprep.subr.bf16.mxu0 0
        %1316 = vmatpush1.bf16.msra.mxu0 %v1310
        %1317 = vmatprep.subr.bf16.mxu0 0
        %1318 = vmatpush1.bf16.msra.mxu0 0
        %1319 = vmatprep.subr.bf16.mxu0 0
        %1320 = vmatpush1.bf16.msra.mxu0 0
        %1321 = vmatprep.subr.bf16.mxu0 0
        %1322 = vmatpush1.bf16.msra.mxu0 0
        %1323 = vmatprep.subr.bf16.mxu0 0
        %1324 = vmatpush1.bf16.msra.mxu0 0
        %1325 = vmatprep.subr.bf16.mxu0 0
        %1326 = vmatpush1.bf16.msra.mxu0 0
        %1327 = vmatprep.subr.bf16.mxu0 0
        %1328 = vmatpush1.bf16.msra.mxu0 0
        %1329 = vmatprep.subr.bf16.mxu0 0
        %1330 = vmatpush1.bf16.msra.mxu0 0
        %1331 = vmatprep.subr.bf16.mxu0 0
        %1332 = vmatpush1.bf16.msra.mxu0 0
        %1333 = vmatprep.subr.bf16.mxu0 0
        %1334 = vmatpush1.bf16.msra.mxu0 0
        %1335 = vmatprep.subr.bf16.mxu0 0
        %1336 = vmatpush1.bf16.msra.mxu0 0
        %1337 = vmatprep.subr.bf16.mxu0 0
        %1338 = vmatpush1.bf16.msra.mxu0 0
        %1339 = vmatprep.subr.bf16.mxu0 0
        %1340 = vmatpush1.bf16.msra.mxu0 0
        %1341 = vmatprep.subr.bf16.mxu0 0
        %1342 = vmatpush1.bf16.msra.mxu0 0
        %1343 = vmatprep.subr.bf16.mxu0 0
        %1344 = vmatpush1.bf16.msra.mxu0 0
        %1345 = vmatprep.subr.bf16.mxu0 0
        %1346 = vmatpush1.bf16.msra.mxu0 0
        %1347 = vmatprep.mubr.bf16.mxu0 0
        %1348 = vmatmul.mubr.bf16.gmra.mrb[0].mxu0 %v1313
        %v1349 = vpop.f32.mrb[0].mxu0
        %v1350 = vadd.f32 %v1304, %v1349
        %v1351 = vpop.f32.mrb[0].mxu0
        %v1352 = vpop.f32.mrb[0].mxu0
        %v1353 = vpop.f32.mrb[0].mxu0
        %1354 = vdwg.mxu0
        %1355 = vst.msk [vmem:[%s589] sm:$0xff] %vm965, %v1350
      $region80: #{tpu_custom_call.1} parent=71 // pred_fallthru
        _
      %p1356 = scmp.lt.s32.totalorder %s28, 1
      %s1357 = scalar_select %p1356, %s28, 1
      %s1358 = smul.addr %s1357, 8
      %s1359 = scalar_lea.vmem %s13, %s1358
      // Predicated region
      $region81: #{tpu_custom_call.1} parent=71 // pred_check
        %p1360 = pneg %p372
      $region82: #{tpu_custom_call.1} parent=71 // pred_check_branch
        %1362 = sbr.rel (%p1360) target = $region84
      $region83: #{tpu_custom_call.1} parent=71 // pred_region
        _
      $region84: #{tpu_custom_call.1} parent=71 // pred_fallthru
        _
    $region72: #{tpu_custom_call.1} parent=5 // pred_fallthru
      _
    %p1363 = scmp.le.s32.totalorder 2, %s19
    // Predicated region
    $region85: #{tpu_custom_call.1} parent=5 // pred_check
      %p1364 = pneg %p1363
    $region86: #{tpu_custom_call.1} parent=5 // pred_check_branch
      %1366 = sbr.rel (%p1364) target = $region88
    $region87: #{tpu_custom_call.1} parent=5 // pred_region
      %s1367 = ssub.s32 %s19, 2
      // Predicated region
      $region89: #{tpu_custom_call.1} parent=87 // pred_check
        %p1368 = pneg %p378
      $region90: #{tpu_custom_call.1} parent=87 // pred_check_branch
        %1370 = sbr.rel (%p1368) target = $region92
      $region91: #{tpu_custom_call.1} parent=87 // pred_region
        %p1371 = scmp.lt.s32.totalorder %s30, 1
        %s1372 = scalar_select %p1371, %s30, 1
        %s1373 = smul.addr %s1372, 8
        %s1374 = scalar_lea.vmem %s13, %s1373
      $region92: #{tpu_custom_call.1} parent=87 // pred_fallthru
        _
    $region88: #{tpu_custom_call.1} parent=5 // pred_fallthru
      _
  $region6: #{tpu_custom_call.1} parent=0 // loop_footer
    %s23 = sadd.s32 1, %s19
  $region7: #{tpu_custom_call.1} parent=0 // loop_footer_branch
    %18 = sbr.rel target = $region3
  $region8: #{tpu_custom_call.1} parent=0 // loop_exit
    _

</llo_original>
